<compile_context>
chip_gen: v7x
topology: tpu7x:2x2x1
jax: 0.10.0
libtpu: 0.0.40
codegen_flags: <defaults>
</compile_context>

<pallas_src>
import jax
import jax.numpy as jnp
from jax import lax
from jax.experimental import pallas as pl
from jax.experimental.pallas import tpu as pltpu


def gcn_kernel(x_ref,            # (T*B, I)  time-major, flattened
               wi_ref,           # (I, 3H)   packed input weights  [r | z | n]
               wh_ref,           # (H, 3H)   packed hidden weights [r | z | n]
               bg_ref,           # (1, 3H)   packed [b_ir+b_hr | b_iz+b_hz | b_in]
               bhn_ref,          # (1, H)    hidden-side n-gate bias (inside r*(...))
               fcw_ref, fcb_ref,
               p1w_ref, p1b_ref,
               p2w_ref, p2b_ref,
               out_ref):         # (B, C)
    B = out_ref.shape[0]
    TB, _ = x_ref.shape
    T = TB // B
    H = wh_ref.shape[0]

    wi = wi_ref[...]
    wh = wh_ref[...]
    bg = bg_ref[...]
    bhn = bhn_ref[...]

    # ---- hoisted input projection for ALL timesteps: one well-shaped matmul ----
    gx_all = jnp.dot(x_ref[...], wi, preferred_element_type=jnp.float32) + bg   # (T*B, 3H)

    # ---- GRU recurrence (PyTorch gate order r, z, n); fully unrolled, 1 matmul/step ----
    h = jnp.zeros((B, H), dtype=jnp.float32)
    for t in range(T):                                    # T static & tiny -> full unroll
        gx = gx_all[t * B:(t + 1) * B, :]                                        # (B, 3H)
        gh = jnp.dot(h, wh, preferred_element_type=jnp.float32)                  # (B, 3H)
        r = jax.nn.sigmoid(gx[:, 0:H] + gh[:, 0:H])
        z = jax.nn.sigmoid(gx[:, H:2 * H] + gh[:, H:2 * H])
        n = jnp.tanh(gx[:, 2 * H:3 * H] + r * (gh[:, 2 * H:3 * H] + bhn))
        h = n + z * (h - n)                               # == (1-z)*n + z*h

    # ---- GCN aggregation with all-ones adjacency: A_hat = ones/B == batch mean ----
    # Every aggregated row equals the mean, so the head only needs one row.
    mean = jnp.sum(h, axis=0, keepdims=True) * (1.0 / B)                          # (1, H)

    # ---- fc + LeakyReLU(0.01) on the single mean row ----
    g = jnp.dot(mean, fcw_ref[...], preferred_element_type=jnp.float32) + fcb_ref[...]
    g = jnp.where(g >= 0.0, g, 0.01 * g)

    # ---- projection: Linear -> GELU(exact, erf) -> Linear ----
    g1 = jnp.dot(g, p1w_ref[...], preferred_element_type=jnp.float32) + p1b_ref[...]
    g1 = 0.5 * g1 * (1.0 + lax.erf(g1 * jnp.float32(0.7071067811865475)))
    row = (jnp.dot(g1, p2w_ref[...], preferred_element_type=jnp.float32)
           + p2b_ref[...])                                                        # (1, C)

    # Broadcast the identical row to all B output rows.
    out_ref[...] = jnp.broadcast_to(row, out_ref.shape)


def gcn_forward(x, params):
    B, T, I = x.shape
    C = params["p2_w"].shape[1]
    # Time-major, flattened: row block t*B:(t+1)*B holds x[:, t, :].
    x_tm = jnp.transpose(x, (1, 0, 2)).reshape(T * B, I).astype(jnp.float32)

    # Host-side packing (gate order r, z, n).
    w_i = jnp.concatenate([params["w_ir"], params["w_iz"], params["w_in"]], axis=1)   # (I, 3H)
    w_h = jnp.concatenate([params["w_hr"], params["w_hz"], params["w_hn"]], axis=1)   # (H, 3H)
    b_g = jnp.concatenate([params["b_ir"] + params["b_hr"],
                           params["b_iz"] + params["b_hz"],
                           params["b_in"]], axis=1)                                   # (1, 3H)

    inputs = (x_tm, w_i, w_h, b_g, params["b_hn"],
              params["fc_w"], params["fc_b"],
              params["p1_w"], params["p1_b"],
              params["p2_w"], params["p2_b"])

    out = pl.pallas_call(
        gcn_kernel,
        out_shape=jax.ShapeDtypeStruct((B, C), jnp.float32),
        in_specs=[pl.BlockSpec(memory_space=pltpu.MemorySpace.VMEM)] * len(inputs),
        out_specs=pl.BlockSpec(memory_space=pltpu.MemorySpace.VMEM),
    )(*inputs)
    # TODO(synk): if B or C grow, emit a lane-dense output layout and add a parallel
    #             grid over B-blocks (v7x has 2 TensorCores); moot at (4, 1).
    return jnp.squeeze(out)                                              # matches .squeeze()


def init_params(key, enc_in, d_model, d_ff, c_out):
    ks = jax.random.split(key, 20)
    s = 0.1
    p = {
        # GRU weights (stored transposed: (in, H) / (H, H)), gate order r, z, n
        "w_ir": s * jax.random.normal(ks[0], (enc_in, d_model), jnp.float32),
        "w_iz": s * jax.random.normal(ks[1], (enc_in, d_model), jnp.float32),
        "w_in": s * jax.random.normal(ks[2], (enc_in, d_model), jnp.float32),
        "w_hr": s * jax.random.normal(ks[3], (d_model, d_model), jnp.float32),
        "w_hz": s * jax.random.normal(ks[4], (d_model, d_model), jnp.float32),
        "w_hn": s * jax.random.normal(ks[5], (d_model, d_model), jnp.float32),
        "b_ir": s * jax.random.normal(ks[6], (1, d_model), jnp.float32),
        "b_iz": s * jax.random.normal(ks[7], (1, d_model), jnp.float32),
        "b_in": s * jax.random.normal(ks[8], (1, d_model), jnp.float32),
        "b_hr": s * jax.random.normal(ks[9], (1, d_model), jnp.float32),
        "b_hz": s * jax.random.normal(ks[10], (1, d_model), jnp.float32),
        "b_hn": s * jax.random.normal(ks[11], (1, d_model), jnp.float32),
        # fc (H -> H)
        "fc_w": s * jax.random.normal(ks[12], (d_model, d_model), jnp.float32),
        "fc_b": s * jax.random.normal(ks[13], (1, d_model), jnp.float32),
        # projection (H -> d_ff -> c_out)
        "p1_w": s * jax.random.normal(ks[14], (d_model, d_ff), jnp.float32),
        "p1_b": s * jax.random.normal(ks[15], (1, d_ff), jnp.float32),
        "p2_w": s * jax.random.normal(ks[16], (d_ff, c_out), jnp.float32),
        "p2_b": s * jax.random.normal(ks[17], (1, c_out), jnp.float32),
    }
    return p


def gcn_reference(x, params):
    """Pure-JAX reference of the same forward pass (unpacked weights)."""
    B, T, _ = x.shape
    H = params["fc_w"].shape[0]
    h = jnp.zeros((B, H), jnp.float32)
    for t in range(T):
        x_t = x[:, t, :]
        r = jax.nn.sigmoid(x_t @ params["w_ir"] + params["b_ir"] + h @ params["w_hr"] + params["b_hr"])
        z = jax.nn.sigmoid(x_t @ params["w_iz"] + params["b_iz"] + h @ params["w_hz"] + params["b_hz"])
        n = jnp.tanh(x_t @ params["w_in"] + params["b_in"] + r * (h @ params["w_hn"] + params["b_hn"]))
        h = (1.0 - z) * n + z * h
    A = jnp.ones((B, B), jnp.float32)
    D = jnp.clip(A.sum(axis=1), 1e-6, None)
    dinv = jnp.sqrt(1.0 / D)
    a_hat = dinv[:, None] * A * dinv[None, :]
    h = a_hat @ h
    h = h @ params["fc_w"] + params["fc_b"]
    h = jnp.where(h >= 0.0, h, 0.01 * h)
    h1 = h @ params["p1_w"] + params["p1_b"]
    h1 = 0.5 * h1 * (1.0 + lax.erf(h1 / jnp.sqrt(2.0)))
    out = h1 @ params["p2_w"] + params["p2_b"]
    return jnp.squeeze(out)


if __name__ == "__main__":
    # Small shapes consistent with the module's forward.
    B, T = 4, 8            # batch, sequence length
    ENC_IN, D_MODEL, D_FF, C_OUT = 4, 32, 32, 1

    key = jax.random.PRNGKey(0)
    k_x, k_p = jax.random.split(key)
    x = jax.random.normal(k_x, (B, T, ENC_IN), jnp.float32)   # (B, T, enc_in), batch_first
    params = init_params(k_p, ENC_IN, D_MODEL, D_FF, C_OUT)

    out = gcn_forward(x, params)
    out = jax.block_until_ready(out)

    ref = gcn_reference(x, params)
    assert out.shape == ref.shape == (B,)
    assert jnp.allclose(out, ref, atol=1e-4, rtol=1e-4), (out, ref)
    print("KERNEL_OK")
</pallas_src>

<mosaic_0001>
module attributes {stable_mosaic.version = 11 : i64} {
  func.func @gcn_kernel(%arg0: memref<32x4xf32, #tpu.memory_space<vmem>>, %arg1: memref<4x96xf32, #tpu.memory_space<vmem>>, %arg2: memref<32x96xf32, #tpu.memory_space<vmem>>, %arg3: memref<1x96xf32, #tpu.memory_space<vmem>>, %arg4: memref<1x32xf32, #tpu.memory_space<vmem>>, %arg5: memref<32x32xf32, #tpu.memory_space<vmem>>, %arg6: memref<1x32xf32, #tpu.memory_space<vmem>>, %arg7: memref<32x32xf32, #tpu.memory_space<vmem>>, %arg8: memref<1x32xf32, #tpu.memory_space<vmem>>, %arg9: memref<32x1xf32, #tpu.memory_space<vmem>>, %arg10: memref<1x1xf32, #tpu.memory_space<vmem>>, %arg11: memref<4x1xf32, #tpu.memory_space<vmem>>) attributes {dimension_semantics = [], scalar_prefetch = 0 : i64, scratch_operands = 0 : i64, tpu.core_type = #tpu.core_type<tc>} {
    %c0 = arith.constant 0 : index
    %c0_0 = arith.constant 0 : index
    %0 = vector.load %arg1[%c0, %c0_0] : memref<4x96xf32, #tpu.memory_space<vmem>>, vector<4x96xf32>
    %c0_1 = arith.constant 0 : index
    %c0_2 = arith.constant 0 : index
    %1 = vector.load %arg2[%c0_1, %c0_2] : memref<32x96xf32, #tpu.memory_space<vmem>>, vector<32x96xf32>
    %c0_3 = arith.constant 0 : index
    %c0_4 = arith.constant 0 : index
    %2 = vector.load %arg3[%c0_3, %c0_4] : memref<1x96xf32, #tpu.memory_space<vmem>>, vector<1x96xf32>
    %c0_5 = arith.constant 0 : index
    %c0_6 = arith.constant 0 : index
    %3 = vector.load %arg4[%c0_5, %c0_6] : memref<1x32xf32, #tpu.memory_space<vmem>>, vector<1x32xf32>
    %c0_7 = arith.constant 0 : index
    %c0_8 = arith.constant 0 : index
    %4 = vector.load %arg0[%c0_7, %c0_8] : memref<32x4xf32, #tpu.memory_space<vmem>>, vector<32x4xf32>
    %cst = arith.constant dense<0.000000e+00> : vector<32x96xf32>
    %5 = tpu.matmul %4, %0, %cst {dimension_numbers = #tpu.dot_dimension_numbers<[1], [0], [0], [1], [0, 0, 1, 1], [], []>} : vector<32x4xf32>, vector<4x96xf32>, vector<32x96xf32> -> vector<32x96xf32>
    %6 = vector.broadcast %2 : vector<1x96xf32> to vector<32x96xf32>
    %7 = arith.addf %5, %6 : vector<32x96xf32>
    %cst_9 = arith.constant 0.000000e+00 : f32
    %8 = vector.broadcast %cst_9 : f32 to vector<4x32xf32>
    %9 = vector.extract_strided_slice %7 {offsets = [0, 0], sizes = [4, 96], strides = [1, 1]} : vector<32x96xf32> to vector<4x96xf32>
    %cst_10 = arith.constant dense<0.000000e+00> : vector<4x96xf32>
    %10 = tpu.matmul %8, %1, %cst_10 {dimension_numbers = #tpu.dot_dimension_numbers<[1], [0], [0], [1], [0, 0, 1, 1], [], []>} : vector<4x32xf32>, vector<32x96xf32>, vector<4x96xf32> -> vector<4x96xf32>
    %11 = vector.extract_strided_slice %9 {offsets = [0, 0], sizes = [4, 32], strides = [1, 1]} : vector<4x96xf32> to vector<4x32xf32>
    %12 = vector.extract_strided_slice %10 {offsets = [0, 0], sizes = [4, 32], strides = [1, 1]} : vector<4x96xf32> to vector<4x32xf32>
    %13 = arith.addf %11, %12 : vector<4x32xf32>
    %14 = arith.negf %13 : vector<4x32xf32>
    %15 = math.exp %14 : vector<4x32xf32>
    %cst_11 = arith.constant 1.000000e+00 : f32
    %16 = vector.broadcast %cst_11 : f32 to vector<4x32xf32>
    %17 = arith.addf %16, %15 : vector<4x32xf32>
    %18 = arith.divf %16, %17 : vector<4x32xf32>
    %19 = vector.extract_strided_slice %9 {offsets = [0, 32], sizes = [4, 32], strides = [1, 1]} : vector<4x96xf32> to vector<4x32xf32>
    %20 = vector.extract_strided_slice %10 {offsets = [0, 32], sizes = [4, 32], strides = [1, 1]} : vector<4x96xf32> to vector<4x32xf32>
    %21 = arith.addf %19, %20 : vector<4x32xf32>
    %22 = arith.negf %21 : vector<4x32xf32>
    %23 = math.exp %22 : vector<4x32xf32>
    %cst_12 = arith.constant 1.000000e+00 : f32
    %24 = vector.broadcast %cst_12 : f32 to vector<4x32xf32>
    %25 = arith.addf %24, %23 : vector<4x32xf32>
    %26 = arith.divf %24, %25 : vector<4x32xf32>
    %27 = vector.extract_strided_slice %9 {offsets = [0, 64], sizes = [4, 32], strides = [1, 1]} : vector<4x96xf32> to vector<4x32xf32>
    %28 = vector.extract_strided_slice %10 {offsets = [0, 64], sizes = [4, 32], strides = [1, 1]} : vector<4x96xf32> to vector<4x32xf32>
    %29 = vector.broadcast %3 : vector<1x32xf32> to vector<4x32xf32>
    %30 = arith.addf %28, %29 : vector<4x32xf32>
    %31 = arith.mulf %18, %30 : vector<4x32xf32>
    %32 = arith.addf %27, %31 : vector<4x32xf32>
    %33 = math.tanh %32 : vector<4x32xf32>
    %34 = arith.subf %8, %33 : vector<4x32xf32>
    %35 = arith.mulf %26, %34 : vector<4x32xf32>
    %36 = arith.addf %33, %35 : vector<4x32xf32>
    %37 = vector.extract_strided_slice %7 {offsets = [4, 0], sizes = [4, 96], strides = [1, 1]} : vector<32x96xf32> to vector<4x96xf32>
    %cst_13 = arith.constant dense<0.000000e+00> : vector<4x96xf32>
    %38 = tpu.matmul %36, %1, %cst_13 {dimension_numbers = #tpu.dot_dimension_numbers<[1], [0], [0], [1], [0, 0, 1, 1], [], []>} : vector<4x32xf32>, vector<32x96xf32>, vector<4x96xf32> -> vector<4x96xf32>
    %39 = vector.extract_strided_slice %37 {offsets = [0, 0], sizes = [4, 32], strides = [1, 1]} : vector<4x96xf32> to vector<4x32xf32>
    %40 = vector.extract_strided_slice %38 {offsets = [0, 0], sizes = [4, 32], strides = [1, 1]} : vector<4x96xf32> to vector<4x32xf32>
    %41 = arith.addf %39, %40 : vector<4x32xf32>
    %42 = arith.negf %41 : vector<4x32xf32>
    %43 = math.exp %42 : vector<4x32xf32>
    %cst_14 = arith.constant 1.000000e+00 : f32
    %44 = vector.broadcast %cst_14 : f32 to vector<4x32xf32>
    %45 = arith.addf %44, %43 : vector<4x32xf32>
    %46 = arith.divf %44, %45 : vector<4x32xf32>
    %47 = vector.extract_strided_slice %37 {offsets = [0, 32], sizes = [4, 32], strides = [1, 1]} : vector<4x96xf32> to vector<4x32xf32>
    %48 = vector.extract_strided_slice %38 {offsets = [0, 32], sizes = [4, 32], strides = [1, 1]} : vector<4x96xf32> to vector<4x32xf32>
    %49 = arith.addf %47, %48 : vector<4x32xf32>
    %50 = arith.negf %49 : vector<4x32xf32>
    %51 = math.exp %50 : vector<4x32xf32>
    %cst_15 = arith.constant 1.000000e+00 : f32
    %52 = vector.broadcast %cst_15 : f32 to vector<4x32xf32>
    %53 = arith.addf %52, %51 : vector<4x32xf32>
    %54 = arith.divf %52, %53 : vector<4x32xf32>
    %55 = vector.extract_strided_slice %37 {offsets = [0, 64], sizes = [4, 32], strides = [1, 1]} : vector<4x96xf32> to vector<4x32xf32>
    %56 = vector.extract_strided_slice %38 {offsets = [0, 64], sizes = [4, 32], strides = [1, 1]} : vector<4x96xf32> to vector<4x32xf32>
    %57 = vector.broadcast %3 : vector<1x32xf32> to vector<4x32xf32>
    %58 = arith.addf %56, %57 : vector<4x32xf32>
    %59 = arith.mulf %46, %58 : vector<4x32xf32>
    %60 = arith.addf %55, %59 : vector<4x32xf32>
    %61 = math.tanh %60 : vector<4x32xf32>
    %62 = arith.subf %36, %61 : vector<4x32xf32>
    %63 = arith.mulf %54, %62 : vector<4x32xf32>
    %64 = arith.addf %61, %63 : vector<4x32xf32>
    %65 = vector.extract_strided_slice %7 {offsets = [8, 0], sizes = [4, 96], strides = [1, 1]} : vector<32x96xf32> to vector<4x96xf32>
    %cst_16 = arith.constant dense<0.000000e+00> : vector<4x96xf32>
    %66 = tpu.matmul %64, %1, %cst_16 {dimension_numbers = #tpu.dot_dimension_numbers<[1], [0], [0], [1], [0, 0, 1, 1], [], []>} : vector<4x32xf32>, vector<32x96xf32>, vector<4x96xf32> -> vector<4x96xf32>
    %67 = vector.extract_strided_slice %65 {offsets = [0, 0], sizes = [4, 32], strides = [1, 1]} : vector<4x96xf32> to vector<4x32xf32>
    %68 = vector.extract_strided_slice %66 {offsets = [0, 0], sizes = [4, 32], strides = [1, 1]} : vector<4x96xf32> to vector<4x32xf32>
    %69 = arith.addf %67, %68 : vector<4x32xf32>
    %70 = arith.negf %69 : vector<4x32xf32>
    %71 = math.exp %70 : vector<4x32xf32>
    %cst_17 = arith.constant 1.000000e+00 : f32
    %72 = vector.broadcast %cst_17 : f32 to vector<4x32xf32>
    %73 = arith.addf %72, %71 : vector<4x32xf32>
    %74 = arith.divf %72, %73 : vector<4x32xf32>
    %75 = vector.extract_strided_slice %65 {offsets = [0, 32], sizes = [4, 32], strides = [1, 1]} : vector<4x96xf32> to vector<4x32xf32>
    %76 = vector.extract_strided_slice %66 {offsets = [0, 32], sizes = [4, 32], strides = [1, 1]} : vector<4x96xf32> to vector<4x32xf32>
    %77 = arith.addf %75, %76 : vector<4x32xf32>
    %78 = arith.negf %77 : vector<4x32xf32>
    %79 = math.exp %78 : vector<4x32xf32>
    %cst_18 = arith.constant 1.000000e+00 : f32
    %80 = vector.broadcast %cst_18 : f32 to vector<4x32xf32>
    %81 = arith.addf %80, %79 : vector<4x32xf32>
    %82 = arith.divf %80, %81 : vector<4x32xf32>
    %83 = vector.extract_strided_slice %65 {offsets = [0, 64], sizes = [4, 32], strides = [1, 1]} : vector<4x96xf32> to vector<4x32xf32>
    %84 = vector.extract_strided_slice %66 {offsets = [0, 64], sizes = [4, 32], strides = [1, 1]} : vector<4x96xf32> to vector<4x32xf32>
    %85 = vector.broadcast %3 : vector<1x32xf32> to vector<4x32xf32>
    %86 = arith.addf %84, %85 : vector<4x32xf32>
    %87 = arith.mulf %74, %86 : vector<4x32xf32>
    %88 = arith.addf %83, %87 : vector<4x32xf32>
    %89 = math.tanh %88 : vector<4x32xf32>
    %90 = arith.subf %64, %89 : vector<4x32xf32>
    %91 = arith.mulf %82, %90 : vector<4x32xf32>
    %92 = arith.addf %89, %91 : vector<4x32xf32>
    %93 = vector.extract_strided_slice %7 {offsets = [12, 0], sizes = [4, 96], strides = [1, 1]} : vector<32x96xf32> to vector<4x96xf32>
    %cst_19 = arith.constant dense<0.000000e+00> : vector<4x96xf32>
    %94 = tpu.matmul %92, %1, %cst_19 {dimension_numbers = #tpu.dot_dimension_numbers<[1], [0], [0], [1], [0, 0, 1, 1], [], []>} : vector<4x32xf32>, vector<32x96xf32>, vector<4x96xf32> -> vector<4x96xf32>
    %95 = vector.extract_strided_slice %93 {offsets = [0, 0], sizes = [4, 32], strides = [1, 1]} : vector<4x96xf32> to vector<4x32xf32>
    %96 = vector.extract_strided_slice %94 {offsets = [0, 0], sizes = [4, 32], strides = [1, 1]} : vector<4x96xf32> to vector<4x32xf32>
    %97 = arith.addf %95, %96 : vector<4x32xf32>
    %98 = arith.negf %97 : vector<4x32xf32>
    %99 = math.exp %98 : vector<4x32xf32>
    %cst_20 = arith.constant 1.000000e+00 : f32
    %100 = vector.broadcast %cst_20 : f32 to vector<4x32xf32>
    %101 = arith.addf %100, %99 : vector<4x32xf32>
    %102 = arith.divf %100, %101 : vector<4x32xf32>
    %103 = vector.extract_strided_slice %93 {offsets = [0, 32], sizes = [4, 32], strides = [1, 1]} : vector<4x96xf32> to vector<4x32xf32>
    %104 = vector.extract_strided_slice %94 {offsets = [0, 32], sizes = [4, 32], strides = [1, 1]} : vector<4x96xf32> to vector<4x32xf32>
    %105 = arith.addf %103, %104 : vector<4x32xf32>
    %106 = arith.negf %105 : vector<4x32xf32>
    %107 = math.exp %106 : vector<4x32xf32>
    %cst_21 = arith.constant 1.000000e+00 : f32
    %108 = vector.broadcast %cst_21 : f32 to vector<4x32xf32>
    %109 = arith.addf %108, %107 : vector<4x32xf32>
    %110 = arith.divf %108, %109 : vector<4x32xf32>
    %111 = vector.extract_strided_slice %93 {offsets = [0, 64], sizes = [4, 32], strides = [1, 1]} : vector<4x96xf32> to vector<4x32xf32>
    %112 = vector.extract_strided_slice %94 {offsets = [0, 64], sizes = [4, 32], strides = [1, 1]} : vector<4x96xf32> to vector<4x32xf32>
    %113 = vector.broadcast %3 : vector<1x32xf32> to vector<4x32xf32>
    %114 = arith.addf %112, %113 : vector<4x32xf32>
    %115 = arith.mulf %102, %114 : vector<4x32xf32>
    %116 = arith.addf %111, %115 : vector<4x32xf32>
    %117 = math.tanh %116 : vector<4x32xf32>
    %118 = arith.subf %92, %117 : vector<4x32xf32>
    %119 = arith.mulf %110, %118 : vector<4x32xf32>
    %120 = arith.addf %117, %119 : vector<4x32xf32>
    %121 = vector.extract_strided_slice %7 {offsets = [16, 0], sizes = [4, 96], strides = [1, 1]} : vector<32x96xf32> to vector<4x96xf32>
    %cst_22 = arith.constant dense<0.000000e+00> : vector<4x96xf32>
    %122 = tpu.matmul %120, %1, %cst_22 {dimension_numbers = #tpu.dot_dimension_numbers<[1], [0], [0], [1], [0, 0, 1, 1], [], []>} : vector<4x32xf32>, vector<32x96xf32>, vector<4x96xf32> -> vector<4x96xf32>
    %123 = vector.extract_strided_slice %121 {offsets = [0, 0], sizes = [4, 32], strides = [1, 1]} : vector<4x96xf32> to vector<4x32xf32>
    %124 = vector.extract_strided_slice %122 {offsets = [0, 0], sizes = [4, 32], strides = [1, 1]} : vector<4x96xf32> to vector<4x32xf32>
    %125 = arith.addf %123, %124 : vector<4x32xf32>
    %126 = arith.negf %125 : vector<4x32xf32>
    %127 = math.exp %126 : vector<4x32xf32>
    %cst_23 = arith.constant 1.000000e+00 : f32
    %128 = vector.broadcast %cst_23 : f32 to vector<4x32xf32>
    %129 = arith.addf %128, %127 : vector<4x32xf32>
    %130 = arith.divf %128, %129 : vector<4x32xf32>
    %131 = vector.extract_strided_slice %121 {offsets = [0, 32], sizes = [4, 32], strides = [1, 1]} : vector<4x96xf32> to vector<4x32xf32>
    %132 = vector.extract_strided_slice %122 {offsets = [0, 32], sizes = [4, 32], strides = [1, 1]} : vector<4x96xf32> to vector<4x32xf32>
    %133 = arith.addf %131, %132 : vector<4x32xf32>
    %134 = arith.negf %133 : vector<4x32xf32>
    %135 = math.exp %134 : vector<4x32xf32>
    %cst_24 = arith.constant 1.000000e+00 : f32
    %136 = vector.broadcast %cst_24 : f32 to vector<4x32xf32>
    %137 = arith.addf %136, %135 : vector<4x32xf32>
    %138 = arith.divf %136, %137 : vector<4x32xf32>
    %139 = vector.extract_strided_slice %121 {offsets = [0, 64], sizes = [4, 32], strides = [1, 1]} : vector<4x96xf32> to vector<4x32xf32>
    %140 = vector.extract_strided_slice %122 {offsets = [0, 64], sizes = [4, 32], strides = [1, 1]} : vector<4x96xf32> to vector<4x32xf32>
    %141 = vector.broadcast %3 : vector<1x32xf32> to vector<4x32xf32>
    %142 = arith.addf %140, %141 : vector<4x32xf32>
    %143 = arith.mulf %130, %142 : vector<4x32xf32>
    %144 = arith.addf %139, %143 : vector<4x32xf32>
    %145 = math.tanh %144 : vector<4x32xf32>
    %146 = arith.subf %120, %145 : vector<4x32xf32>
    %147 = arith.mulf %138, %146 : vector<4x32xf32>
    %148 = arith.addf %145, %147 : vector<4x32xf32>
    %149 = vector.extract_strided_slice %7 {offsets = [20, 0], sizes = [4, 96], strides = [1, 1]} : vector<32x96xf32> to vector<4x96xf32>
    %cst_25 = arith.constant dense<0.000000e+00> : vector<4x96xf32>
    %150 = tpu.matmul %148, %1, %cst_25 {dimension_numbers = #tpu.dot_dimension_numbers<[1], [0], [0], [1], [0, 0, 1, 1], [], []>} : vector<4x32xf32>, vector<32x96xf32>, vector<4x96xf32> -> vector<4x96xf32>
    %151 = vector.extract_strided_slice %149 {offsets = [0, 0], sizes = [4, 32], strides = [1, 1]} : vector<4x96xf32> to vector<4x32xf32>
    %152 = vector.extract_strided_slice %150 {offsets = [0, 0], sizes = [4, 32], strides = [1, 1]} : vector<4x96xf32> to vector<4x32xf32>
    %153 = arith.addf %151, %152 : vector<4x32xf32>
    %154 = arith.negf %153 : vector<4x32xf32>
    %155 = math.exp %154 : vector<4x32xf32>
    %cst_26 = arith.constant 1.000000e+00 : f32
    %156 = vector.broadcast %cst_26 : f32 to vector<4x32xf32>
    %157 = arith.addf %156, %155 : vector<4x32xf32>
    %158 = arith.divf %156, %157 : vector<4x32xf32>
    %159 = vector.extract_strided_slice %149 {offsets = [0, 32], sizes = [4, 32], strides = [1, 1]} : vector<4x96xf32> to vector<4x32xf32>
    %160 = vector.extract_strided_slice %150 {offsets = [0, 32], sizes = [4, 32], strides = [1, 1]} : vector<4x96xf32> to vector<4x32xf32>
    %161 = arith.addf %159, %160 : vector<4x32xf32>
    %162 = arith.negf %161 : vector<4x32xf32>
    %163 = math.exp %162 : vector<4x32xf32>
    %cst_27 = arith.constant 1.000000e+00 : f32
    %164 = vector.broadcast %cst_27 : f32 to vector<4x32xf32>
    %165 = arith.addf %164, %163 : vector<4x32xf32>
    %166 = arith.divf %164, %165 : vector<4x32xf32>
    %167 = vector.extract_strided_slice %149 {offsets = [0, 64], sizes = [4, 32], strides = [1, 1]} : vector<4x96xf32> to vector<4x32xf32>
    %168 = vector.extract_strided_slice %150 {offsets = [0, 64], sizes = [4, 32], strides = [1, 1]} : vector<4x96xf32> to vector<4x32xf32>
    %169 = vector.broadcast %3 : vector<1x32xf32> to vector<4x32xf32>
    %170 = arith.addf %168, %169 : vector<4x32xf32>
    %171 = arith.mulf %158, %170 : vector<4x32xf32>
    %172 = arith.addf %167, %171 : vector<4x32xf32>
    %173 = math.tanh %172 : vector<4x32xf32>
    %174 = arith.subf %148, %173 : vector<4x32xf32>
    %175 = arith.mulf %166, %174 : vector<4x32xf32>
    %176 = arith.addf %173, %175 : vector<4x32xf32>
    %177 = vector.extract_strided_slice %7 {offsets = [24, 0], sizes = [4, 96], strides = [1, 1]} : vector<32x96xf32> to vector<4x96xf32>
    %cst_28 = arith.constant dense<0.000000e+00> : vector<4x96xf32>
    %178 = tpu.matmul %176, %1, %cst_28 {dimension_numbers = #tpu.dot_dimension_numbers<[1], [0], [0], [1], [0, 0, 1, 1], [], []>} : vector<4x32xf32>, vector<32x96xf32>, vector<4x96xf32> -> vector<4x96xf32>
    %179 = vector.extract_strided_slice %177 {offsets = [0, 0], sizes = [4, 32], strides = [1, 1]} : vector<4x96xf32> to vector<4x32xf32>
    %180 = vector.extract_strided_slice %178 {offsets = [0, 0], sizes = [4, 32], strides = [1, 1]} : vector<4x96xf32> to vector<4x32xf32>
    %181 = arith.addf %179, %180 : vector<4x32xf32>
    %182 = arith.negf %181 : vector<4x32xf32>
    %183 = math.exp %182 : vector<4x32xf32>
    %cst_29 = arith.constant 1.000000e+00 : f32
    %184 = vector.broadcast %cst_29 : f32 to vector<4x32xf32>
    %185 = arith.addf %184, %183 : vector<4x32xf32>
    %186 = arith.divf %184, %185 : vector<4x32xf32>
    %187 = vector.extract_strided_slice %177 {offsets = [0, 32], sizes = [4, 32], strides = [1, 1]} : vector<4x96xf32> to vector<4x32xf32>
    %188 = vector.extract_strided_slice %178 {offsets = [0, 32], sizes = [4, 32], strides = [1, 1]} : vector<4x96xf32> to vector<4x32xf32>
    %189 = arith.addf %187, %188 : vector<4x32xf32>
    %190 = arith.negf %189 : vector<4x32xf32>
    %191 = math.exp %190 : vector<4x32xf32>
    %cst_30 = arith.constant 1.000000e+00 : f32
    %192 = vector.broadcast %cst_30 : f32 to vector<4x32xf32>
    %193 = arith.addf %192, %191 : vector<4x32xf32>
    %194 = arith.divf %192, %193 : vector<4x32xf32>
    %195 = vector.extract_strided_slice %177 {offsets = [0, 64], sizes = [4, 32], strides = [1, 1]} : vector<4x96xf32> to vector<4x32xf32>
    %196 = vector.extract_strided_slice %178 {offsets = [0, 64], sizes = [4, 32], strides = [1, 1]} : vector<4x96xf32> to vector<4x32xf32>
    %197 = vector.broadcast %3 : vector<1x32xf32> to vector<4x32xf32>
    %198 = arith.addf %196, %197 : vector<4x32xf32>
    %199 = arith.mulf %186, %198 : vector<4x32xf32>
    %200 = arith.addf %195, %199 : vector<4x32xf32>
    %201 = math.tanh %200 : vector<4x32xf32>
    %202 = arith.subf %176, %201 : vector<4x32xf32>
    %203 = arith.mulf %194, %202 : vector<4x32xf32>
    %204 = arith.addf %201, %203 : vector<4x32xf32>
    %205 = vector.extract_strided_slice %7 {offsets = [28, 0], sizes = [4, 96], strides = [1, 1]} : vector<32x96xf32> to vector<4x96xf32>
    %cst_31 = arith.constant dense<0.000000e+00> : vector<4x96xf32>
    %206 = tpu.matmul %204, %1, %cst_31 {dimension_numbers = #tpu.dot_dimension_numbers<[1], [0], [0], [1], [0, 0, 1, 1], [], []>} : vector<4x32xf32>, vector<32x96xf32>, vector<4x96xf32> -> vector<4x96xf32>
    %207 = vector.extract_strided_slice %205 {offsets = [0, 0], sizes = [4, 32], strides = [1, 1]} : vector<4x96xf32> to vector<4x32xf32>
    %208 = vector.extract_strided_slice %206 {offsets = [0, 0], sizes = [4, 32], strides = [1, 1]} : vector<4x96xf32> to vector<4x32xf32>
    %209 = arith.addf %207, %208 : vector<4x32xf32>
    %210 = arith.negf %209 : vector<4x32xf32>
    %211 = math.exp %210 : vector<4x32xf32>
    %cst_32 = arith.constant 1.000000e+00 : f32
    %212 = vector.broadcast %cst_32 : f32 to vector<4x32xf32>
    %213 = arith.addf %212, %211 : vector<4x32xf32>
    %214 = arith.divf %212, %213 : vector<4x32xf32>
    %215 = vector.extract_strided_slice %205 {offsets = [0, 32], sizes = [4, 32], strides = [1, 1]} : vector<4x96xf32> to vector<4x32xf32>
    %216 = vector.extract_strided_slice %206 {offsets = [0, 32], sizes = [4, 32], strides = [1, 1]} : vector<4x96xf32> to vector<4x32xf32>
    %217 = arith.addf %215, %216 : vector<4x32xf32>
    %218 = arith.negf %217 : vector<4x32xf32>
    %219 = math.exp %218 : vector<4x32xf32>
    %cst_33 = arith.constant 1.000000e+00 : f32
    %220 = vector.broadcast %cst_33 : f32 to vector<4x32xf32>
    %221 = arith.addf %220, %219 : vector<4x32xf32>
    %222 = arith.divf %220, %221 : vector<4x32xf32>
    %223 = vector.extract_strided_slice %205 {offsets = [0, 64], sizes = [4, 32], strides = [1, 1]} : vector<4x96xf32> to vector<4x32xf32>
    %224 = vector.extract_strided_slice %206 {offsets = [0, 64], sizes = [4, 32], strides = [1, 1]} : vector<4x96xf32> to vector<4x32xf32>
    %225 = vector.broadcast %3 : vector<1x32xf32> to vector<4x32xf32>
    %226 = arith.addf %224, %225 : vector<4x32xf32>
    %227 = arith.mulf %214, %226 : vector<4x32xf32>
    %228 = arith.addf %223, %227 : vector<4x32xf32>
    %229 = math.tanh %228 : vector<4x32xf32>
    %230 = arith.subf %204, %229 : vector<4x32xf32>
    %231 = arith.mulf %222, %230 : vector<4x32xf32>
    %232 = arith.addf %229, %231 : vector<4x32xf32>
    %cst_34 = arith.constant dense<0.000000e+00> : vector<32xf32>
    %233 = vector.multi_reduction <add>, %232, %cst_34 [0] : vector<4x32xf32> to vector<32xf32>
    %234 = vector.shape_cast %233 : vector<32xf32> to vector<1x32xf32>
    %cst_35 = arith.constant 2.500000e-01 : f32
    %235 = vector.broadcast %cst_35 : f32 to vector<1x32xf32>
    %236 = arith.mulf %234, %235 : vector<1x32xf32>
    %c0_36 = arith.constant 0 : index
    %c0_37 = arith.constant 0 : index
    %237 = vector.load %arg5[%c0_36, %c0_37] : memref<32x32xf32, #tpu.memory_space<vmem>>, vector<32x32xf32>
    %cst_38 = arith.constant dense<0.000000e+00> : vector<1x32xf32>
    %238 = tpu.matmul %236, %237, %cst_38 {dimension_numbers = #tpu.dot_dimension_numbers<[1], [0], [0], [1], [0, 0, 1, 1], [], []>} : vector<1x32xf32>, vector<32x32xf32>, vector<1x32xf32> -> vector<1x32xf32>
    %c0_39 = arith.constant 0 : index
    %c0_40 = arith.constant 0 : index
    %239 = vector.load %arg6[%c0_39, %c0_40] : memref<1x32xf32, #tpu.memory_space<vmem>>, vector<1x32xf32>
    %240 = arith.addf %238, %239 : vector<1x32xf32>
    %cst_41 = arith.constant 0.000000e+00 : f32
    %241 = vector.broadcast %cst_41 : f32 to vector<1x32xf32>
    %242 = arith.cmpf oge, %240, %241 : vector<1x32xf32>
    %cst_42 = arith.constant 0.00999999977 : f32
    %243 = vector.broadcast %cst_42 : f32 to vector<1x32xf32>
    %244 = arith.mulf %243, %240 : vector<1x32xf32>
    %245 = arith.select %242, %240, %244 : vector<1x32xi1>, vector<1x32xf32>
    %c0_43 = arith.constant 0 : index
    %c0_44 = arith.constant 0 : index
    %246 = vector.load %arg7[%c0_43, %c0_44] : memref<32x32xf32, #tpu.memory_space<vmem>>, vector<32x32xf32>
    %cst_45 = arith.constant dense<0.000000e+00> : vector<1x32xf32>
    %247 = tpu.matmul %245, %246, %cst_45 {dimension_numbers = #tpu.dot_dimension_numbers<[1], [0], [0], [1], [0, 0, 1, 1], [], []>} : vector<1x32xf32>, vector<32x32xf32>, vector<1x32xf32> -> vector<1x32xf32>
    %c0_46 = arith.constant 0 : index
    %c0_47 = arith.constant 0 : index
    %248 = vector.load %arg8[%c0_46, %c0_47] : memref<1x32xf32, #tpu.memory_space<vmem>>, vector<1x32xf32>
    %249 = arith.addf %247, %248 : vector<1x32xf32>
    %cst_48 = arith.constant 5.000000e-01 : f32
    %250 = vector.broadcast %cst_48 : f32 to vector<1x32xf32>
    %251 = arith.mulf %250, %249 : vector<1x32xf32>
    %cst_49 = arith.constant 0.707106769 : f32
    %252 = vector.broadcast %cst_49 : f32 to vector<1x32xf32>
    %253 = arith.mulf %249, %252 : vector<1x32xf32>
    %254 = math.erf %253 : vector<1x32xf32>
    %cst_50 = arith.constant 1.000000e+00 : f32
    %255 = vector.broadcast %cst_50 : f32 to vector<1x32xf32>
    %256 = arith.addf %255, %254 : vector<1x32xf32>
    %257 = arith.mulf %251, %256 : vector<1x32xf32>
    %c0_51 = arith.constant 0 : index
    %c0_52 = arith.constant 0 : index
    %258 = vector.load %arg9[%c0_51, %c0_52] : memref<32x1xf32, #tpu.memory_space<vmem>>, vector<32x1xf32>
    %cst_53 = arith.constant dense<0.000000e+00> : vector<1x1xf32>
    %259 = tpu.matmul %257, %258, %cst_53 {dimension_numbers = #tpu.dot_dimension_numbers<[1], [0], [0], [1], [0, 0, 1, 1], [], []>} : vector<1x32xf32>, vector<32x1xf32>, vector<1x1xf32> -> vector<1x1xf32>
    %c0_54 = arith.constant 0 : index
    %c0_55 = arith.constant 0 : index
    %260 = vector.load %arg10[%c0_54, %c0_55] : memref<1x1xf32, #tpu.memory_space<vmem>>, vector<1x1xf32>
    %261 = arith.addf %259, %260 : vector<1x1xf32>
    %262 = vector.shape_cast %261 : vector<1x1xf32> to vector<1x1xf32>
    %263 = vector.broadcast %262 : vector<1x1xf32> to vector<4x1xf32>
    %c0_56 = arith.constant 0 : index
    %c0_57 = arith.constant 0 : index
    %264 = vector.load %arg11[%c0_56, %c0_57] : memref<4x1xf32, #tpu.memory_space<vmem>>, vector<4x1xf32>
    tpu.vector_store %arg11[%c0_56, %c0_57], %263 {strides = array<i32>} : memref<4x1xf32, #tpu.memory_space<vmem>>, vector<4x1xf32>,
    return
  }
}

</mosaic_0001>

<llo_original>
// kernel: tpu_custom_call.1
$region0: #{tpu_custom_call.1}
  #allocation0 [shape = 'u32[]', space=smem, size = 0x4, offset = 0x4, fixed_abs, tag = 'smem constant byte address 0x4 - core index']
  #allocation1 [shape = 'u32[144,128]{1,0:T(1,128)}', space=vmem, size = 0x12000, scoped, tag = 'internal scratch']
  #allocation2 [shape = 'f32[1,1]{1,0:T(1,128)S(1)}', space=vmem, size = 0x200, scoped, tag = 'scoped memory for tpu_custom_call.1']
  %s0 = inlined_call_operand.vmem [shape: f32[32,4], index: 0, kind: input, shape index: {}]
  %s1 = inlined_call_operand.hbm [shape: f32[4,96], index: 1, kind: input, shape index: {}]
  %s2 = inlined_call_operand.vmem [shape: f32[32,96], index: 2, kind: input, shape index: {}]
  %s3 = inlined_call_operand.vmem [shape: f32[1,96], index: 3, kind: input, shape index: {}]
  %s4 = inlined_call_operand.vmem [shape: f32[1,32], index: 4, kind: input, shape index: {}]
  %s5 = inlined_call_operand.vmem [shape: f32[32,32], index: 5, kind: input, shape index: {}]
  %s6 = inlined_call_operand.vmem [shape: f32[1,32], index: 6, kind: input, shape index: {}]
  %s7 = inlined_call_operand.vmem [shape: f32[32,32], index: 7, kind: input, shape index: {}]
  %s8 = inlined_call_operand.vmem [shape: f32[1,32], index: 8, kind: input, shape index: {}]
  %s9 = inlined_call_operand.vmem [shape: f32[32,1], index: 9, kind: input, shape index: {}]
  %s10 = inlined_call_operand.<no memory space> [shape: f32[1,1], index: 10, kind: input, shape index: {}]
  %s11 = inlined_call_operand.vmem [shape: f32[4,1], index: 11, kind: output, shape index: {}]
  %s12 = sld [smem:[#allocation0]]
  $region58: #{tpu_custom_call.1} parent=0
    _
  %s14 = ssub.s32 1, %s12
  %s15 = scalar_select 0, %s14, %s12
  %v16 = vstv %s10
  %17 = vst [vmem:[#allocation2] sm:$0x1] %v16
  $region1: #{tpu_custom_call.1} parent=0
    #allocation3 [shape = 'u8[2048]{0}', space=vmem, size = 0x800, scoped, tag = 'input window, operand 1, single buffered']
    #allocation4 [shape = 's32[1]{0}', space=sflag, size = 0x4, scoped, tag = 'scoped memory for tpu_custom_call.1']
    %18 = vsyncpa [#allocation4], 0
    // Predicated region
    $region2: #{tpu_custom_call.1} parent=1 // pred_check
      _
    $region3: #{tpu_custom_call.1} parent=1 // pred_check_branch
      %20 = sbr.rel (0) target = $region5
    $region4: #{tpu_custom_call.1} parent=1 // pred_region
      _
    $region5: #{tpu_custom_call.1} parent=1 // pred_fallthru
      _
    // Predicated region
    $region6: #{tpu_custom_call.1} parent=1 // pred_check
      _
    $region7: #{tpu_custom_call.1} parent=1 // pred_check_branch
      %22 = sbr.rel (0) target = $region9
    $region8: #{tpu_custom_call.1} parent=1 // pred_region
      %s24 = ssub.s32 64, 64
      %25 = vsyncadd [#allocation4], %s24
      %s27 = sshll.u32 [#allocation3], 4
      %s28 = int_to_ptr.vmem [resolvable:$true] %s27
      %30 = dma.hbm_to_vmem [thread:$0]  %s1, 64, %s28, [#allocation4]
    $region9: #{tpu_custom_call.1} parent=1 // pred_fallthru
      _
    // Predicated region
    $region10: #{tpu_custom_call.1} parent=1 // pred_check
      _
    $region11: #{tpu_custom_call.1} parent=1 // pred_check_branch
      %32 = sbr.rel (0) target = $region13
    $region12: #{tpu_custom_call.1} parent=1 // pred_region
      _
    $region13: #{tpu_custom_call.1} parent=1 // pred_fallthru
      _
    // Predicated region
    $region14: #{tpu_custom_call.1} parent=1 // pred_check
      _
    $region15: #{tpu_custom_call.1} parent=1 // pred_check_branch
      %34 = sbr.rel (0) target = $region17
    $region16: #{tpu_custom_call.1} parent=1 // pred_region
      _
    $region17: #{tpu_custom_call.1} parent=1 // pred_fallthru
      _
    // Predicated region
    $region18: #{tpu_custom_call.1} parent=1 // pred_check
      _
    $region19: #{tpu_custom_call.1} parent=1 // pred_check_branch
      %36 = sbr.rel (0) target = $region21
    $region20: #{tpu_custom_call.1} parent=1 // pred_region
      _
    $region21: #{tpu_custom_call.1} parent=1 // pred_fallthru
      _
    // Predicated region
    $region22: #{tpu_custom_call.1} parent=1 // pred_check
      _
    $region23: #{tpu_custom_call.1} parent=1 // pred_check_branch
      %38 = sbr.rel (0) target = $region25
    $region24: #{tpu_custom_call.1} parent=1 // pred_region
      _
    $region25: #{tpu_custom_call.1} parent=1 // pred_fallthru
      _
    // Predicated region
    $region26: #{tpu_custom_call.1} parent=1 // pred_check
      _
    $region27: #{tpu_custom_call.1} parent=1 // pred_check_branch
      %40 = sbr.rel (0) target = $region29
    $region28: #{tpu_custom_call.1} parent=1 // pred_region
      _
    $region29: #{tpu_custom_call.1} parent=1 // pred_fallthru
      _
    // Predicated region
    $region30: #{tpu_custom_call.1} parent=1 // pred_check
      _
    $region31: #{tpu_custom_call.1} parent=1 // pred_check_branch
      %42 = sbr.rel (0) target = $region33
    $region32: #{tpu_custom_call.1} parent=1 // pred_region
      _
    $region33: #{tpu_custom_call.1} parent=1 // pred_fallthru
      _
    // Predicated region
    $region34: #{tpu_custom_call.1} parent=1 // pred_check
      _
    $region35: #{tpu_custom_call.1} parent=1 // pred_check_branch
      %44 = sbr.rel (0) target = $region37
    $region36: #{tpu_custom_call.1} parent=1 // pred_region
      _
    $region37: #{tpu_custom_call.1} parent=1 // pred_fallthru
      _
    // Predicated region
    $region38: #{tpu_custom_call.1} parent=1 // pred_check
      _
    $region39: #{tpu_custom_call.1} parent=1 // pred_check_branch
      %46 = sbr.rel (0) target = $region41
    $region40: #{tpu_custom_call.1} parent=1 // pred_region
      _
    $region41: #{tpu_custom_call.1} parent=1 // pred_fallthru
      _
    // Predicated region
    $region42: #{tpu_custom_call.1} parent=1 // pred_check
      _
    $region43: #{tpu_custom_call.1} parent=1 // pred_check_branch
      %48 = sbr.rel (0) target = $region45
    $region44: #{tpu_custom_call.1} parent=1 // pred_region
      _
    $region45: #{tpu_custom_call.1} parent=1 // pred_fallthru
      _
    // Predicated region
    $region46: #{tpu_custom_call.1} parent=1 // pred_check
      _
    $region47: #{tpu_custom_call.1} parent=1 // pred_check_branch
      %50 = sbr.rel (0) target = $region49
    $region48: #{tpu_custom_call.1} parent=1 // pred_region
      %51 = dma.done [#allocation4], 64
    $region49: #{tpu_custom_call.1} parent=1 // pred_fallthru
      _
    %v52 = vld [vmem:[#allocation3] sm:$0xf]
    %v53 = vld [vmem:[%s2] sm:$0xff]
    %v54 = vld [vmem:[%s2 + $0x8] sm:$0xff]
    %v55 = vld [vmem:[%s2 + $0x10] sm:$0xff]
    %v56 = vld [vmem:[%s2 + $0x18] sm:$0xff]
    %v57 = vld [vmem:[%s3] sm:$0x1]
    %v58 = vld [vmem:[%s4] sm:$0x1]
    %v59 = vld [vmem:[%s0] sm:$0xff]
    %v60 = vld [vmem:[%s0 + $0x8] sm:$0xff]
    %v61 = vld [vmem:[%s0 + $0x10] sm:$0xff]
    %v62 = vld [vmem:[%s0 + $0x18] sm:$0xff]
    %v64 = vlaneseq
    %v65 = vshrl.u32 %v64, 7
    %v66 = vsub.s32 0, %v65
    %v67 = vrot.slane %v57, %v66
    %vm69 = vcmask 31744
    %v71 = vsel %vm69, %v59, 0
    %v74 = vsel %vm69, %v60, 0
    %v77 = vsel %vm69, %v61, 0
    %v80 = vsel %vm69, %v62, 0
    %vm82 = vcmask 1043456
    %v84 = vsel %vm82, %v52, 0
    %86 = vmatprep.subr.mxu0 0.0
    %87 = vmatpush1.msra.mxu0 %v84
    %88 = vmatprep.subr.mxu0 0.0
    %89 = vmatpush1.msra.mxu0 0.0
    %90 = vmatprep.subr.mxu0 0.0
    %91 = vmatpush1.msra.mxu0 0.0
    %92 = vmatprep.subr.mxu0 0.0
    %93 = vmatpush1.msra.mxu0 0.0
    %94 = vmatprep.subr.mxu0 0.0
    %95 = vmatpush1.msra.mxu0 0.0
    %96 = vmatprep.subr.mxu0 0.0
    %97 = vmatpush1.msra.mxu0 0.0
    %98 = vmatprep.subr.mxu0 0.0
    %99 = vmatpush1.msra.mxu0 0.0
    %100 = vmatprep.subr.mxu0 0.0
    %101 = vmatpush1.msra.mxu0 0.0
    %102 = vmatprep.subr.mxu0 0.0
    %103 = vmatpush1.msra.mxu0 0.0
    %104 = vmatprep.subr.mxu0 0.0
    %105 = vmatpush1.msra.mxu0 0.0
    %106 = vmatprep.subr.mxu0 0.0
    %107 = vmatpush1.msra.mxu0 0.0
    %108 = vmatprep.subr.mxu0 0.0
    %109 = vmatpush1.msra.mxu0 0.0
    %110 = vmatprep.subr.mxu0 0.0
    %111 = vmatpush1.msra.mxu0 0.0
    %112 = vmatprep.subr.mxu0 0.0
    %113 = vmatpush1.msra.mxu0 0.0
    %114 = vmatprep.subr.mxu0 0.0
    %115 = vmatpush1.msra.mxu0 0.0
    %116 = vmatprep.subr.mxu0 0.0
    %117 = vmatpush1.msra.mxu0 0.0
    %118 = vmatprep.subr.mxu0 0.0
    %119 = vmatpush1.msra.mxu0 0.0
    %120 = vmatprep.subr.mxu0 0.0
    %121 = vmatpush1.msra.mxu0 0.0
    %122 = vmatprep.subr.mxu0 0.0
    %123 = vmatpush1.msra.mxu0 0.0
    %124 = vmatprep.subr.mxu0 0.0
    %125 = vmatpush1.msra.mxu0 0.0
    %126 = vmatprep.subr.mxu0 0.0
    %127 = vmatpush1.msra.mxu0 0.0
    %128 = vmatprep.subr.mxu0 0.0
    %129 = vmatpush1.msra.mxu0 0.0
    %130 = vmatprep.subr.mxu0 0.0
    %131 = vmatpush1.msra.mxu0 0.0
    %132 = vmatprep.subr.mxu0 0.0
    %133 = vmatpush1.msra.mxu0 0.0
    %134 = vmatprep.subr.mxu0 0.0
    %135 = vmatpush1.msra.mxu0 0.0
    %136 = vmatprep.subr.mxu0 0.0
    %137 = vmatpush1.msra.mxu0 0.0
    %138 = vmatprep.subr.mxu0 0.0
    %139 = vmatpush1.msra.mxu0 0.0
    %140 = vmatprep.subr.mxu0 0.0
    %141 = vmatpush1.msra.mxu0 0.0
    %142 = vmatprep.subr.mxu0 0.0
    %143 = vmatpush1.msra.mxu0 0.0
    %144 = vmatprep.subr.mxu0 0.0
    %145 = vmatpush1.msra.mxu0 0.0
    %146 = vmatprep.subr.mxu0 0.0
    %147 = vmatpush1.msra.mxu0 0.0
    %148 = vmatprep.subr.mxu0 0.0
    %149 = vmatpush1.msra.mxu0 0.0
    %150 = vmatprep.mubr.f32.mxu0 0.0
    %151 = vmatmul.mubr.f32.gmra.mrb[0].mxu0 %v71
    %v152 = vpop.f32.mrb[0].mxu0
    %v153 = vadd.f32 %v67, %v152
    %v154 = vpop.f32.mrb[0].mxu0
    %155 = vmatprep.mubr.f32.mxu0 0.0
    %156 = vmatmul.mubr.f32.gmra.mrb[0].mxu0 %v74
    %v157 = vpop.f32.mrb[0].mxu0
    %v158 = vadd.f32 %v67, %v157
    %v159 = vpop.f32.mrb[0].mxu0
    %160 = vmatprep.mubr.f32.mxu0 0.0
    %161 = vmatmul.mubr.f32.gmra.mrb[0].mxu0 %v77
    %v162 = vpop.f32.mrb[0].mxu0
    %v163 = vadd.f32 %v67, %v162
    %v164 = vpop.f32.mrb[0].mxu0
    %165 = vmatprep.mubr.f32.mxu0 0.0
    %166 = vmatmul.mubr.f32.gmra.mrb[0].mxu0 %v80
    %v167 = vpop.f32.mrb[0].mxu0
    %v168 = vadd.f32 %v67, %v167
    %v169 = vpop.f32.mrb[0].mxu0
    %170 = vdwg.mxu0
    %vm171 = vcmask 261120
    %v173 = vsel %vm171, 0.0, 0
    %175 = vmatprep.subr.mxu0 0.0
    %176 = vmatpush1.msra.mxu0 %v53
    %177 = vmatprep.subr.mxu0 0.0
    %178 = vmatpush1.msra.mxu0 %v54
    %179 = vmatprep.subr.mxu0 0.0
    %180 = vmatpush1.msra.mxu0 %v55
    %181 = vmatprep.subr.mxu0 0.0
    %182 = vmatpush1.msra.mxu0 %v56
    %183 = vmatprep.subr.mxu0 0.0
    %184 = vmatpush1.msra.mxu0 0.0
    %185 = vmatprep.subr.mxu0 0.0
    %186 = vmatpush1.msra.mxu0 0.0
    %187 = vmatprep.subr.mxu0 0.0
    %188 = vmatpush1.msra.mxu0 0.0
    %189 = vmatprep.subr.mxu0 0.0
    %190 = vmatpush1.msra.mxu0 0.0
    %191 = vmatprep.subr.mxu0 0.0
    %192 = vmatpush1.msra.mxu0 0.0
    %193 = vmatprep.subr.mxu0 0.0
    %194 = vmatpush1.msra.mxu0 0.0
    %195 = vmatprep.subr.mxu0 0.0
    %196 = vmatpush1.msra.mxu0 0.0
    %197 = vmatprep.subr.mxu0 0.0
    %198 = vmatpush1.msra.mxu0 0.0
    %199 = vmatprep.subr.mxu0 0.0
    %200 = vmatpush1.msra.mxu0 0.0
    %201 = vmatprep.subr.mxu0 0.0
    %202 = vmatpush1.msra.mxu0 0.0
    %203 = vmatprep.subr.mxu0 0.0
    %204 = vmatpush1.msra.mxu0 0.0
    %205 = vmatprep.subr.mxu0 0.0
    %206 = vmatpush1.msra.mxu0 0.0
    %207 = vmatprep.subr.mxu0 0.0
    %208 = vmatpush1.msra.mxu0 0.0
    %209 = vmatprep.subr.mxu0 0.0
    %210 = vmatpush1.msra.mxu0 0.0
    %211 = vmatprep.subr.mxu0 0.0
    %212 = vmatpush1.msra.mxu0 0.0
    %213 = vmatprep.subr.mxu0 0.0
    %214 = vmatpush1.msra.mxu0 0.0
    %215 = vmatprep.subr.mxu0 0.0
    %216 = vmatpush1.msra.mxu0 0.0
    %217 = vmatprep.subr.mxu0 0.0
    %218 = vmatpush1.msra.mxu0 0.0
    %219 = vmatprep.subr.mxu0 0.0
    %220 = vmatpush1.msra.mxu0 0.0
    %221 = vmatprep.subr.mxu0 0.0
    %222 = vmatpush1.msra.mxu0 0.0
    %223 = vmatprep.subr.mxu0 0.0
    %224 = vmatpush1.msra.mxu0 0.0
    %225 = vmatprep.subr.mxu0 0.0
    %226 = vmatpush1.msra.mxu0 0.0
    %227 = vmatprep.subr.mxu0 0.0
    %228 = vmatpush1.msra.mxu0 0.0
    %229 = vmatprep.subr.mxu0 0.0
    %230 = vmatpush1.msra.mxu0 0.0
    %231 = vmatprep.subr.mxu0 0.0
    %232 = vmatpush1.msra.mxu0 0.0
    %233 = vmatprep.subr.mxu0 0.0
    %234 = vmatpush1.msra.mxu0 0.0
    %235 = vmatprep.subr.mxu0 0.0
    %236 = vmatpush1.msra.mxu0 0.0
    %237 = vmatprep.subr.mxu0 0.0
    %238 = vmatpush1.msra.mxu0 0.0
    %239 = vmatprep.mubr.f32.mxu0 0.0
    %240 = vmatmul.mubr.f32.gmra.mrb[0].mxu0 %v173
    %v241 = vpop.f32.mrb[0].mxu0
    %v242 = vadd.f32 0.0, %v241
    %v243 = vpop.f32.mrb[0].mxu0
    %244 = vdwg.mxu0
    %v245 = vadd.f32 %v153, %v242
    %v246 = vxor.u32 %v245, 2147483648
    %v247 = vmul.f32 %v246, 1.442695
    %v248 = vpow.pop %v247
    %v249 = vadd.f32 %v248, 1.0
    %v250 = vrcp.pop %v249
    %v251 = vmul.f32 1.0, %v250
    %v253 = vlaneseq
    %v254 = vshrl.u32 %v253, 7
    %v255 = vsub.s32 0, %v254
    %v256 = vrot.slane %v58, %v255
    %257 = vrot.lane.b32.xlu0 %v256, 64
    %v258 = vpop.permute.xlu0 %257
    %v260 = vadd.f32 %v242, %v258
    %262 = vrot.lane.b32.xlu0 %v260, 64
    %v263 = vpop.permute.xlu0 %262
    %v265 = vmul.f32 %v251, %v263
    %267 = vrot.lane.b32.xlu0 %v265, 64
    %v268 = vpop.permute.xlu0 %267
    %v270 = vadd.f32 %v153, %v268
    %v271 = vtanh.pop %v270
    %v272 = vsub.f32 0.0, %v271
    %274 = vrot.lane.b32.xlu0 %v272, 96
    %v275 = vpop.permute.xlu0 %274
    %v277 = vmul.f32 %v251, %v275
    %279 = vrot.lane.b32.xlu0 %v277, 32
    %v280 = vpop.permute.xlu0 %279
    %v282 = vadd.f32 %v271, %v280
    %284 = vrot.lane.b32.xlu0 %v282, 64
    %v285 = vpop.permute.xlu0 %284
    %v286 = vsel %vm171, %v285, 0
    %288 = vmatprep.subr.mxu0 0.0
    %289 = vmatpush1.msra.mxu0 %v53
    %290 = vmatprep.subr.mxu0 0.0
    %291 = vmatpush1.msra.mxu0 %v54
    %292 = vmatprep.subr.mxu0 0.0
    %293 = vmatpush1.msra.mxu0 %v55
    %294 = vmatprep.subr.mxu0 0.0
    %295 = vmatpush1.msra.mxu0 %v56
    %296 = vmatprep.subr.mxu0 0.0
    %297 = vmatpush1.msra.mxu0 0.0
    %298 = vmatprep.subr.mxu0 0.0
    %299 = vmatpush1.msra.mxu0 0.0
    %300 = vmatprep.subr.mxu0 0.0
    %301 = vmatpush1.msra.mxu0 0.0
    %302 = vmatprep.subr.mxu0 0.0
    %303 = vmatpush1.msra.mxu0 0.0
    %304 = vmatprep.subr.mxu0 0.0
    %305 = vmatpush1.msra.mxu0 0.0
    %306 = vmatprep.subr.mxu0 0.0
    %307 = vmatpush1.msra.mxu0 0.0
    %308 = vmatprep.subr.mxu0 0.0
    %309 = vmatpush1.msra.mxu0 0.0
    %310 = vmatprep.subr.mxu0 0.0
    %311 = vmatpush1.msra.mxu0 0.0
    %312 = vmatprep.subr.mxu0 0.0
    %313 = vmatpush1.msra.mxu0 0.0
    %314 = vmatprep.subr.mxu0 0.0
    %315 = vmatpush1.msra.mxu0 0.0
    %316 = vmatprep.subr.mxu0 0.0
    %317 = vmatpush1.msra.mxu0 0.0
    %318 = vmatprep.subr.mxu0 0.0
    %319 = vmatpush1.msra.mxu0 0.0
    %320 = vmatprep.subr.mxu0 0.0
    %321 = vmatpush1.msra.mxu0 0.0
    %322 = vmatprep.subr.mxu0 0.0
    %323 = vmatpush1.msra.mxu0 0.0
    %324 = vmatprep.subr.mxu0 0.0
    %325 = vmatpush1.msra.mxu0 0.0
    %326 = vmatprep.subr.mxu0 0.0
    %327 = vmatpush1.msra.mxu0 0.0
    %328 = vmatprep.subr.mxu0 0.0
    %329 = vmatpush1.msra.mxu0 0.0
    %330 = vmatprep.subr.mxu0 0.0
    %331 = vmatpush1.msra.mxu0 0.0
    %332 = vmatprep.subr.mxu0 0.0
    %333 = vmatpush1.msra.mxu0 0.0
    %334 = vmatprep.subr.mxu0 0.0
    %335 = vmatpush1.msra.mxu0 0.0
    %336 = vmatprep.subr.mxu0 0.0
    %337 = vmatpush1.msra.mxu0 0.0
    %338 = vmatprep.subr.mxu0 0.0
    %339 = vmatpush1.msra.mxu0 0.0
    %340 = vmatprep.subr.mxu0 0.0
    %341 = vmatpush1.msra.mxu0 0.0
    %342 = vmatprep.subr.mxu0 0.0
    %343 = vmatpush1.msra.mxu0 0.0
    %344 = vmatprep.subr.mxu0 0.0
    %345 = vmatpush1.msra.mxu0 0.0
    %346 = vmatprep.subr.mxu0 0.0
    %347 = vmatpush1.msra.mxu0 0.0
    %348 = vmatprep.subr.mxu0 0.0
    %349 = vmatpush1.msra.mxu0 0.0
    %350 = vmatprep.subr.mxu0 0.0
    %351 = vmatpush1.msra.mxu0 0.0
    %352 = vmatprep.mubr.f32.mxu0 0.0
    %353 = vmatmul.mubr.f32.gmra.mrb[0].mxu0 %v286
    %v354 = vpop.f32.mrb[0].mxu0
    %v355 = vadd.f32 0.0, %v354
    %v356 = vpop.f32.mrb[0].mxu0
    %357 = vdwg.mxu0
    %v359 = vrot.slane %v355, 4
    %v361 = vadd.f32 %v153, %v359
    %v362 = vxor.u32 %v361, 2147483648
    %v363 = vmul.f32 %v362, 1.442695
    %v364 = vpow.pop %v363
    %v365 = vadd.f32 %v364, 1.0
    %v366 = vrcp.pop %v365
    %v367 = vmul.f32 1.0, %v366
    %v368 = vadd.f32 %v355, %v258
    %v370 = vrot.slane %v368, 4
    %371 = vrot.lane.b32.xlu0 %v370, 64
    %v372 = vpop.permute.xlu0 %371
    %v374 = vmul.f32 %v367, %v372
    %376 = vrot.lane.b32.xlu0 %v374, 64
    %v377 = vpop.permute.xlu0 %376
    %v379 = vadd.f32 %v153, %v377
    %v380 = vtanh.pop %v379
    %v382 = vrot.slane %v380, 4
    %v384 = vsub.f32 %v282, %v382
    %v386 = vrot.slane %v384, 4
    %387 = vrot.lane.b32.xlu0 %v386, 96
    %v388 = vpop.permute.xlu0 %387
    %v390 = vmul.f32 %v367, %v388
    %392 = vrot.lane.b32.xlu0 %v390, 32
    %v393 = vpop.permute.xlu0 %392
    %v395 = vadd.f32 %v380, %v393
    %v397 = vrot.slane %v395, 4
    %398 = vrot.lane.b32.xlu0 %v397, 64
    %v399 = vpop.permute.xlu0 %398
    %v400 = vsel %vm171, %v399, 0
    %402 = vmatprep.subr.mxu0 0.0
    %403 = vmatpush1.msra.mxu0 %v53
    %404 = vmatprep.subr.mxu0 0.0
    %405 = vmatpush1.msra.mxu0 %v54
    %406 = vmatprep.subr.mxu0 0.0
    %407 = vmatpush1.msra.mxu0 %v55
    %408 = vmatprep.subr.mxu0 0.0
    %409 = vmatpush1.msra.mxu0 %v56
    %410 = vmatprep.subr.mxu0 0.0
    %411 = vmatpush1.msra.mxu0 0.0
    %412 = vmatprep.subr.mxu0 0.0
    %413 = vmatpush1.msra.mxu0 0.0
    %414 = vmatprep.subr.mxu0 0.0
    %415 = vmatpush1.msra.mxu0 0.0
    %416 = vmatprep.subr.mxu0 0.0
    %417 = vmatpush1.msra.mxu0 0.0
    %418 = vmatprep.subr.mxu0 0.0
    %419 = vmatpush1.msra.mxu0 0.0
    %420 = vmatprep.subr.mxu0 0.0
    %421 = vmatpush1.msra.mxu0 0.0
    %422 = vmatprep.subr.mxu0 0.0
    %423 = vmatpush1.msra.mxu0 0.0
    %424 = vmatprep.subr.mxu0 0.0
    %425 = vmatpush1.msra.mxu0 0.0
    %426 = vmatprep.subr.mxu0 0.0
    %427 = vmatpush1.msra.mxu0 0.0
    %428 = vmatprep.subr.mxu0 0.0
    %429 = vmatpush1.msra.mxu0 0.0
    %430 = vmatprep.subr.mxu0 0.0
    %431 = vmatpush1.msra.mxu0 0.0
    %432 = vmatprep.subr.mxu0 0.0
    %433 = vmatpush1.msra.mxu0 0.0
    %434 = vmatprep.subr.mxu0 0.0
    %435 = vmatpush1.msra.mxu0 0.0
    %436 = vmatprep.subr.mxu0 0.0
    %437 = vmatpush1.msra.mxu0 0.0
    %438 = vmatprep.subr.mxu0 0.0
    %439 = vmatpush1.msra.mxu0 0.0
    %440 = vmatprep.subr.mxu0 0.0
    %441 = vmatpush1.msra.mxu0 0.0
    %442 = vmatprep.subr.mxu0 0.0
    %443 = vmatpush1.msra.mxu0 0.0
    %444 = vmatprep.subr.mxu0 0.0
    %445 = vmatpush1.msra.mxu0 0.0
    %446 = vmatprep.subr.mxu0 0.0
    %447 = vmatpush1.msra.mxu0 0.0
    %448 = vmatprep.subr.mxu0 0.0
    %449 = vmatpush1.msra.mxu0 0.0
    %450 = vmatprep.subr.mxu0 0.0
    %451 = vmatpush1.msra.mxu0 0.0
    %452 = vmatprep.subr.mxu0 0.0
    %453 = vmatpush1.msra.mxu0 0.0
    %454 = vmatprep.subr.mxu0 0.0
    %455 = vmatpush1.msra.mxu0 0.0
    %456 = vmatprep.subr.mxu0 0.0
    %457 = vmatpush1.msra.mxu0 0.0
    %458 = vmatprep.subr.mxu0 0.0
    %459 = vmatpush1.msra.mxu0 0.0
    %460 = vmatprep.subr.mxu0 0.0
    %461 = vmatpush1.msra.mxu0 0.0
    %462 = vmatprep.subr.mxu0 0.0
    %463 = vmatpush1.msra.mxu0 0.0
    %464 = vmatprep.subr.mxu0 0.0
    %465 = vmatpush1.msra.mxu0 0.0
    %466 = vmatprep.mubr.f32.mxu0 0.0
    %467 = vmatmul.mubr.f32.gmra.mrb[0].mxu0 %v400
    %v468 = vpop.f32.mrb[0].mxu0
    %v469 = vadd.f32 0.0, %v468
    %v470 = vpop.f32.mrb[0].mxu0
    %471 = vdwg.mxu0
    %v472 = vadd.f32 %v158, %v469
    %v473 = vxor.u32 %v472, 2147483648
    %v474 = vmul.f32 %v473, 1.442695
    %v475 = vpow.pop %v474
    %v476 = vadd.f32 %v475, 1.0
    %v477 = vrcp.pop %v476
    %v478 = vmul.f32 1.0, %v477
    %v479 = vadd.f32 %v469, %v258
    %481 = vrot.lane.b32.xlu0 %v479, 64
    %v482 = vpop.permute.xlu0 %481
    %v484 = vmul.f32 %v478, %v482
    %486 = vrot.lane.b32.xlu0 %v484, 64
    %v487 = vpop.permute.xlu0 %486
    %v489 = vadd.f32 %v158, %v487
    %v490 = vtanh.pop %v489
    %v492 = vrot.slane %v490, 4
    %v494 = vsub.f32 %v395, %v492
    %v496 = vrot.slane %v494, 4
    %497 = vrot.lane.b32.xlu0 %v496, 96
    %v498 = vpop.permute.xlu0 %497
    %v500 = vmul.f32 %v478, %v498
    %502 = vrot.lane.b32.xlu0 %v500, 32
    %v503 = vpop.permute.xlu0 %502
    %v505 = vadd.f32 %v490, %v503
    %507 = vrot.lane.b32.xlu0 %v505, 64
    %v508 = vpop.permute.xlu0 %507
    %v509 = vsel %vm171, %v508, 0
    %511 = vmatprep.subr.mxu0 0.0
    %512 = vmatpush1.msra.mxu0 %v53
    %513 = vmatprep.subr.mxu0 0.0
    %514 = vmatpush1.msra.mxu0 %v54
    %515 = vmatprep.subr.mxu0 0.0
    %516 = vmatpush1.msra.mxu0 %v55
    %517 = vmatprep.subr.mxu0 0.0
    %518 = vmatpush1.msra.mxu0 %v56
    %519 = vmatprep.subr.mxu0 0.0
    %520 = vmatpush1.msra.mxu0 0.0
    %521 = vmatprep.subr.mxu0 0.0
    %522 = vmatpush1.msra.mxu0 0.0
    %523 = vmatprep.subr.mxu0 0.0
    %524 = vmatpush1.msra.mxu0 0.0
    %525 = vmatprep.subr.mxu0 0.0
    %526 = vmatpush1.msra.mxu0 0.0
    %527 = vmatprep.subr.mxu0 0.0
    %528 = vmatpush1.msra.mxu0 0.0
    %529 = vmatprep.subr.mxu0 0.0
    %530 = vmatpush1.msra.mxu0 0.0
    %531 = vmatprep.subr.mxu0 0.0
    %532 = vmatpush1.msra.mxu0 0.0
    %533 = vmatprep.subr.mxu0 0.0
    %534 = vmatpush1.msra.mxu0 0.0
    %535 = vmatprep.subr.mxu0 0.0
    %536 = vmatpush1.msra.mxu0 0.0
    %537 = vmatprep.subr.mxu0 0.0
    %538 = vmatpush1.msra.mxu0 0.0
    %539 = vmatprep.subr.mxu0 0.0
    %540 = vmatpush1.msra.mxu0 0.0
    %541 = vmatprep.subr.mxu0 0.0
    %542 = vmatpush1.msra.mxu0 0.0
    %543 = vmatprep.subr.mxu0 0.0
    %544 = vmatpush1.msra.mxu0 0.0
    %545 = vmatprep.subr.mxu0 0.0
    %546 = vmatpush1.msra.mxu0 0.0
    %547 = vmatprep.subr.mxu0 0.0
    %548 = vmatpush1.msra.mxu0 0.0
    %549 = vmatprep.subr.mxu0 0.0
    %550 = vmatpush1.msra.mxu0 0.0
    %551 = vmatprep.subr.mxu0 0.0
    %552 = vmatpush1.msra.mxu0 0.0
    %553 = vmatprep.subr.mxu0 0.0
    %554 = vmatpush1.msra.mxu0 0.0
    %555 = vmatprep.subr.mxu0 0.0
    %556 = vmatpush1.msra.mxu0 0.0
    %557 = vmatprep.subr.mxu0 0.0
    %558 = vmatpush1.msra.mxu0 0.0
    %559 = vmatprep.subr.mxu0 0.0
    %560 = vmatpush1.msra.mxu0 0.0
    %561 = vmatprep.subr.mxu0 0.0
    %562 = vmatpush1.msra.mxu0 0.0
    %563 = vmatprep.subr.mxu0 0.0
    %564 = vmatpush1.msra.mxu0 0.0
    %565 = vmatprep.subr.mxu0 0.0
    %566 = vmatpush1.msra.mxu0 0.0
    %567 = vmatprep.subr.mxu0 0.0
    %568 = vmatpush1.msra.mxu0 0.0
    %569 = vmatprep.subr.mxu0 0.0
    %570 = vmatpush1.msra.mxu0 0.0
    %571 = vmatprep.subr.mxu0 0.0
    %572 = vmatpush1.msra.mxu0 0.0
    %573 = vmatprep.subr.mxu0 0.0
    %574 = vmatpush1.msra.mxu0 0.0
    %575 = vmatprep.mubr.f32.mxu0 0.0
    %576 = vmatmul.mubr.f32.gmra.mrb[0].mxu0 %v509
    %v577 = vpop.f32.mrb[0].mxu0
    %v578 = vadd.f32 0.0, %v577
    %v579 = vpop.f32.mrb[0].mxu0
    %580 = vdwg.mxu0
    %v582 = vrot.slane %v578, 4
    %v584 = vadd.f32 %v158, %v582
    %v585 = vxor.u32 %v584, 2147483648
    %v586 = vmul.f32 %v585, 1.442695
    %v587 = vpow.pop %v586
    %v588 = vadd.f32 %v587, 1.0
    %v589 = vrcp.pop %v588
    %v590 = vmul.f32 1.0, %v589
    %v591 = vadd.f32 %v578, %v258
    %v593 = vrot.slane %v591, 4
    %594 = vrot.lane.b32.xlu0 %v593, 64
    %v595 = vpop.permute.xlu0 %594
    %v597 = vmul.f32 %v590, %v595
    %599 = vrot.lane.b32.xlu0 %v597, 64
    %v600 = vpop.permute.xlu0 %599
    %v602 = vadd.f32 %v158, %v600
    %v603 = vtanh.pop %v602
    %v605 = vrot.slane %v603, 4
    %v607 = vsub.f32 %v505, %v605
    %v609 = vrot.slane %v607, 4
    %610 = vrot.lane.b32.xlu0 %v609, 96
    %v611 = vpop.permute.xlu0 %610
    %v613 = vmul.f32 %v590, %v611
    %615 = vrot.lane.b32.xlu0 %v613, 32
    %v616 = vpop.permute.xlu0 %615
    %v618 = vadd.f32 %v603, %v616
    %v620 = vrot.slane %v618, 4
    %621 = vrot.lane.b32.xlu0 %v620, 64
    %v622 = vpop.permute.xlu0 %621
    %v623 = vsel %vm171, %v622, 0
    %625 = vmatprep.subr.mxu0 0.0
    %626 = vmatpush1.msra.mxu0 %v53
    %627 = vmatprep.subr.mxu0 0.0
    %628 = vmatpush1.msra.mxu0 %v54
    %629 = vmatprep.subr.mxu0 0.0
    %630 = vmatpush1.msra.mxu0 %v55
    %631 = vmatprep.subr.mxu0 0.0
    %632 = vmatpush1.msra.mxu0 %v56
    %633 = vmatprep.subr.mxu0 0.0
    %634 = vmatpush1.msra.mxu0 0.0
    %635 = vmatprep.subr.mxu0 0.0
    %636 = vmatpush1.msra.mxu0 0.0
    %637 = vmatprep.subr.mxu0 0.0
    %638 = vmatpush1.msra.mxu0 0.0
    %639 = vmatprep.subr.mxu0 0.0
    %640 = vmatpush1.msra.mxu0 0.0
    %641 = vmatprep.subr.mxu0 0.0
    %642 = vmatpush1.msra.mxu0 0.0
    %643 = vmatprep.subr.mxu0 0.0
    %644 = vmatpush1.msra.mxu0 0.0
    %645 = vmatprep.subr.mxu0 0.0
    %646 = vmatpush1.msra.mxu0 0.0
    %647 = vmatprep.subr.mxu0 0.0
    %648 = vmatpush1.msra.mxu0 0.0
    %649 = vmatprep.subr.mxu0 0.0
    %650 = vmatpush1.msra.mxu0 0.0
    %651 = vmatprep.subr.mxu0 0.0
    %652 = vmatpush1.msra.mxu0 0.0
    %653 = vmatprep.subr.mxu0 0.0
    %654 = vmatpush1.msra.mxu0 0.0
    %655 = vmatprep.subr.mxu0 0.0
    %656 = vmatpush1.msra.mxu0 0.0
    %657 = vmatprep.subr.mxu0 0.0
    %658 = vmatpush1.msra.mxu0 0.0
    %659 = vmatprep.subr.mxu0 0.0
    %660 = vmatpush1.msra.mxu0 0.0
    %661 = vmatprep.subr.mxu0 0.0
    %662 = vmatpush1.msra.mxu0 0.0
    %663 = vmatprep.subr.mxu0 0.0
    %664 = vmatpush1.msra.mxu0 0.0
    %665 = vmatprep.subr.mxu0 0.0
    %666 = vmatpush1.msra.mxu0 0.0
    %667 = vmatprep.subr.mxu0 0.0
    %668 = vmatpush1.msra.mxu0 0.0
    %669 = vmatprep.subr.mxu0 0.0
    %670 = vmatpush1.msra.mxu0 0.0
    %671 = vmatprep.subr.mxu0 0.0
    %672 = vmatpush1.msra.mxu0 0.0
    %673 = vmatprep.subr.mxu0 0.0
    %674 = vmatpush1.msra.mxu0 0.0
    %675 = vmatprep.subr.mxu0 0.0
    %676 = vmatpush1.msra.mxu0 0.0
    %677 = vmatprep.subr.mxu0 0.0
    %678 = vmatpush1.msra.mxu0 0.0
    %679 = vmatprep.subr.mxu0 0.0
    %680 = vmatpush1.msra.mxu0 0.0
    %681 = vmatprep.subr.mxu0 0.0
    %682 = vmatpush1.msra.mxu0 0.0
    %683 = vmatprep.subr.mxu0 0.0
    %684 = vmatpush1.msra.mxu0 0.0
    %685 = vmatprep.subr.mxu0 0.0
    %686 = vmatpush1.msra.mxu0 0.0
    %687 = vmatprep.subr.mxu0 0.0
    %688 = vmatpush1.msra.mxu0 0.0
    %689 = vmatprep.mubr.f32.mxu0 0.0
    %690 = vmatmul.mubr.f32.gmra.mrb[0].mxu0 %v623
    %v691 = vpop.f32.mrb[0].mxu0
    %v692 = vadd.f32 0.0, %v691
    %v693 = vpop.f32.mrb[0].mxu0
    %694 = vdwg.mxu0
    %v695 = vadd.f32 %v163, %v692
    %v696 = vxor.u32 %v695, 2147483648
    %v697 = vmul.f32 %v696, 1.442695
    %v698 = vpow.pop %v697
    %v699 = vadd.f32 %v698, 1.0
    %v700 = vrcp.pop %v699
    %v701 = vmul.f32 1.0, %v700
    %v702 = vadd.f32 %v692, %v258
    %704 = vrot.lane.b32.xlu0 %v702, 64
    %v705 = vpop.permute.xlu0 %704
    %v707 = vmul.f32 %v701, %v705
    %709 = vrot.lane.b32.xlu0 %v707, 64
    %v710 = vpop.permute.xlu0 %709
    %v712 = vadd.f32 %v163, %v710
    %v713 = vtanh.pop %v712
    %v715 = vrot.slane %v713, 4
    %v717 = vsub.f32 %v618, %v715
    %v719 = vrot.slane %v717, 4
    %720 = vrot.lane.b32.xlu0 %v719, 96
    %v721 = vpop.permute.xlu0 %720
    %v723 = vmul.f32 %v701, %v721
    %725 = vrot.lane.b32.xlu0 %v723, 32
    %v726 = vpop.permute.xlu0 %725
    %v728 = vadd.f32 %v713, %v726
    %730 = vrot.lane.b32.xlu0 %v728, 64
    %v731 = vpop.permute.xlu0 %730
    %v732 = vsel %vm171, %v731, 0
    %734 = vmatprep.subr.mxu0 0.0
    %735 = vmatpush1.msra.mxu0 %v53
    %736 = vmatprep.subr.mxu0 0.0
    %737 = vmatpush1.msra.mxu0 %v54
    %738 = vmatprep.subr.mxu0 0.0
    %739 = vmatpush1.msra.mxu0 %v55
    %740 = vmatprep.subr.mxu0 0.0
    %741 = vmatpush1.msra.mxu0 %v56
    %742 = vmatprep.subr.mxu0 0.0
    %743 = vmatpush1.msra.mxu0 0.0
    %744 = vmatprep.subr.mxu0 0.0
    %745 = vmatpush1.msra.mxu0 0.0
    %746 = vmatprep.subr.mxu0 0.0
    %747 = vmatpush1.msra.mxu0 0.0
    %748 = vmatprep.subr.mxu0 0.0
    %749 = vmatpush1.msra.mxu0 0.0
    %750 = vmatprep.subr.mxu0 0.0
    %751 = vmatpush1.msra.mxu0 0.0
    %752 = vmatprep.subr.mxu0 0.0
    %753 = vmatpush1.msra.mxu0 0.0
    %754 = vmatprep.subr.mxu0 0.0
    %755 = vmatpush1.msra.mxu0 0.0
    %756 = vmatprep.subr.mxu0 0.0
    %757 = vmatpush1.msra.mxu0 0.0
    %758 = vmatprep.subr.mxu0 0.0
    %759 = vmatpush1.msra.mxu0 0.0
    %760 = vmatprep.subr.mxu0 0.0
    %761 = vmatpush1.msra.mxu0 0.0
    %762 = vmatprep.subr.mxu0 0.0
    %763 = vmatpush1.msra.mxu0 0.0
    %764 = vmatprep.subr.mxu0 0.0
    %765 = vmatpush1.msra.mxu0 0.0
    %766 = vmatprep.subr.mxu0 0.0
    %767 = vmatpush1.msra.mxu0 0.0
    %768 = vmatprep.subr.mxu0 0.0
    %769 = vmatpush1.msra.mxu0 0.0
    %770 = vmatprep.subr.mxu0 0.0
    %771 = vmatpush1.msra.mxu0 0.0
    %772 = vmatprep.subr.mxu0 0.0
    %773 = vmatpush1.msra.mxu0 0.0
    %774 = vmatprep.subr.mxu0 0.0
    %775 = vmatpush1.msra.mxu0 0.0
    %776 = vmatprep.subr.mxu0 0.0
    %777 = vmatpush1.msra.mxu0 0.0
    %778 = vmatprep.subr.mxu0 0.0
    %779 = vmatpush1.msra.mxu0 0.0
    %780 = vmatprep.subr.mxu0 0.0
    %781 = vmatpush1.msra.mxu0 0.0
    %782 = vmatprep.subr.mxu0 0.0
    %783 = vmatpush1.msra.mxu0 0.0
    %784 = vmatprep.subr.mxu0 0.0
    %785 = vmatpush1.msra.mxu0 0.0
    %786 = vmatprep.subr.mxu0 0.0
    %787 = vmatpush1.msra.mxu0 0.0
    %788 = vmatprep.subr.mxu0 0.0
    %789 = vmatpush1.msra.mxu0 0.0
    %790 = vmatprep.subr.mxu0 0.0
    %791 = vmatpush1.msra.mxu0 0.0
    %792 = vmatprep.subr.mxu0 0.0
    %793 = vmatpush1.msra.mxu0 0.0
    %794 = vmatprep.subr.mxu0 0.0
    %795 = vmatpush1.msra.mxu0 0.0
    %796 = vmatprep.subr.mxu0 0.0
    %797 = vmatpush1.msra.mxu0 0.0
    %798 = vmatprep.mubr.f32.mxu0 0.0
    %799 = vmatmul.mubr.f32.gmra.mrb[0].mxu0 %v732
    %v800 = vpop.f32.mrb[0].mxu0
    %v801 = vadd.f32 0.0, %v800
    %v802 = vpop.f32.mrb[0].mxu0
    %803 = vdwg.mxu0
    %v805 = vrot.slane %v801, 4
    %v807 = vadd.f32 %v163, %v805
    %v808 = vxor.u32 %v807, 2147483648
    %v809 = vmul.f32 %v808, 1.442695
    %v810 = vpow.pop %v809
    %v811 = vadd.f32 %v810, 1.0
    %v812 = vrcp.pop %v811
    %v813 = vmul.f32 1.0, %v812
    %v814 = vadd.f32 %v801, %v258
    %v816 = vrot.slane %v814, 4
    %817 = vrot.lane.b32.xlu0 %v816, 64
    %v818 = vpop.permute.xlu0 %817
    %v820 = vmul.f32 %v813, %v818
    %822 = vrot.lane.b32.xlu0 %v820, 64
    %v823 = vpop.permute.xlu0 %822
    %v825 = vadd.f32 %v163, %v823
    %v826 = vtanh.pop %v825
    %v828 = vrot.slane %v826, 4
    %v830 = vsub.f32 %v728, %v828
    %v832 = vrot.slane %v830, 4
    %833 = vrot.lane.b32.xlu0 %v832, 96
    %v834 = vpop.permute.xlu0 %833
    %v836 = vmul.f32 %v813, %v834
    %838 = vrot.lane.b32.xlu0 %v836, 32
    %v839 = vpop.permute.xlu0 %838
    %v841 = vadd.f32 %v826, %v839
    %v843 = vrot.slane %v841, 4
    %844 = vrot.lane.b32.xlu0 %v843, 64
    %v845 = vpop.permute.xlu0 %844
    %v846 = vsel %vm171, %v845, 0
    %848 = vmatprep.subr.mxu0 0.0
    %849 = vmatpush1.msra.mxu0 %v53
    %850 = vmatprep.subr.mxu0 0.0
    %851 = vmatpush1.msra.mxu0 %v54
    %852 = vmatprep.subr.mxu0 0.0
    %853 = vmatpush1.msra.mxu0 %v55
    %854 = vmatprep.subr.mxu0 0.0
    %855 = vmatpush1.msra.mxu0 %v56
    %856 = vmatprep.subr.mxu0 0.0
    %857 = vmatpush1.msra.mxu0 0.0
    %858 = vmatprep.subr.mxu0 0.0
    %859 = vmatpush1.msra.mxu0 0.0
    %860 = vmatprep.subr.mxu0 0.0
    %861 = vmatpush1.msra.mxu0 0.0
    %862 = vmatprep.subr.mxu0 0.0
    %863 = vmatpush1.msra.mxu0 0.0
    %864 = vmatprep.subr.mxu0 0.0
    %865 = vmatpush1.msra.mxu0 0.0
    %866 = vmatprep.subr.mxu0 0.0
    %867 = vmatpush1.msra.mxu0 0.0
    %868 = vmatprep.subr.mxu0 0.0
    %869 = vmatpush1.msra.mxu0 0.0
    %870 = vmatprep.subr.mxu0 0.0
    %871 = vmatpush1.msra.mxu0 0.0
    %872 = vmatprep.subr.mxu0 0.0
    %873 = vmatpush1.msra.mxu0 0.0
    %874 = vmatprep.subr.mxu0 0.0
    %875 = vmatpush1.msra.mxu0 0.0
    %876 = vmatprep.subr.mxu0 0.0
    %877 = vmatpush1.msra.mxu0 0.0
    %878 = vmatprep.subr.mxu0 0.0
    %879 = vmatpush1.msra.mxu0 0.0
    %880 = vmatprep.subr.mxu0 0.0
    %881 = vmatpush1.msra.mxu0 0.0
    %882 = vmatprep.subr.mxu0 0.0
    %883 = vmatpush1.msra.mxu0 0.0
    %884 = vmatprep.subr.mxu0 0.0
    %885 = vmatpush1.msra.mxu0 0.0
    %886 = vmatprep.subr.mxu0 0.0
    %887 = vmatpush1.msra.mxu0 0.0
    %888 = vmatprep.subr.mxu0 0.0
    %889 = vmatpush1.msra.mxu0 0.0
    %890 = vmatprep.subr.mxu0 0.0
    %891 = vmatpush1.msra.mxu0 0.0
    %892 = vmatprep.subr.mxu0 0.0
    %893 = vmatpush1.msra.mxu0 0.0
    %894 = vmatprep.subr.mxu0 0.0
    %895 = vmatpush1.msra.mxu0 0.0
    %896 = vmatprep.subr.mxu0 0.0
    %897 = vmatpush1.msra.mxu0 0.0
    %898 = vmatprep.subr.mxu0 0.0
    %899 = vmatpush1.msra.mxu0 0.0
    %900 = vmatprep.subr.mxu0 0.0
    %901 = vmatpush1.msra.mxu0 0.0
    %902 = vmatprep.subr.mxu0 0.0
    %903 = vmatpush1.msra.mxu0 0.0
    %904 = vmatprep.subr.mxu0 0.0
    %905 = vmatpush1.msra.mxu0 0.0
    %906 = vmatprep.subr.mxu0 0.0
    %907 = vmatpush1.msra.mxu0 0.0
    %908 = vmatprep.subr.mxu0 0.0
    %909 = vmatpush1.msra.mxu0 0.0
    %910 = vmatprep.subr.mxu0 0.0
    %911 = vmatpush1.msra.mxu0 0.0
    %912 = vmatprep.mubr.f32.mxu0 0.0
    %913 = vmatmul.mubr.f32.gmra.mrb[0].mxu0 %v846
    %v914 = vpop.f32.mrb[0].mxu0
    %v915 = vadd.f32 0.0, %v914
    %v916 = vpop.f32.mrb[0].mxu0
    %917 = vdwg.mxu0
    %v918 = vadd.f32 %v168, %v915
    %v919 = vxor.u32 %v918, 2147483648
    %v920 = vmul.f32 %v919, 1.442695
    %v921 = vpow.pop %v920
    %v922 = vadd.f32 %v921, 1.0
    %v923 = vrcp.pop %v922
    %v924 = vmul.f32 1.0, %v923
    %v925 = vadd.f32 %v915, %v258
    %927 = vrot.lane.b32.xlu0 %v925, 64
    %v928 = vpop.permute.xlu0 %927
    %v930 = vmul.f32 %v924, %v928
    %932 = vrot.lane.b32.xlu0 %v930, 64
    %v933 = vpop.permute.xlu0 %932
    %v935 = vadd.f32 %v168, %v933
    %v936 = vtanh.pop %v935
    %v938 = vrot.slane %v936, 4
    %v940 = vsub.f32 %v841, %v938
    %v942 = vrot.slane %v940, 4
    %943 = vrot.lane.b32.xlu0 %v942, 96
    %v944 = vpop.permute.xlu0 %943
    %v946 = vmul.f32 %v924, %v944
    %948 = vrot.lane.b32.xlu0 %v946, 32
    %v949 = vpop.permute.xlu0 %948
    %v951 = vadd.f32 %v936, %v949
    %953 = vrot.lane.b32.xlu0 %v951, 64
    %v954 = vpop.permute.xlu0 %953
    %v955 = vsel %vm171, %v954, 0
    %957 = vmatprep.subr.mxu0 0.0
    %958 = vmatpush1.msra.mxu0 %v53
    %959 = vmatprep.subr.mxu0 0.0
    %960 = vmatpush1.msra.mxu0 %v54
    %961 = vmatprep.subr.mxu0 0.0
    %962 = vmatpush1.msra.mxu0 %v55
    %963 = vmatprep.subr.mxu0 0.0
    %964 = vmatpush1.msra.mxu0 %v56
    %965 = vmatprep.subr.mxu0 0.0
    %966 = vmatpush1.msra.mxu0 0.0
    %967 = vmatprep.subr.mxu0 0.0
    %968 = vmatpush1.msra.mxu0 0.0
    %969 = vmatprep.subr.mxu0 0.0
    %970 = vmatpush1.msra.mxu0 0.0
    %971 = vmatprep.subr.mxu0 0.0
    %972 = vmatpush1.msra.mxu0 0.0
    %973 = vmatprep.subr.mxu0 0.0
    %974 = vmatpush1.msra.mxu0 0.0
    %975 = vmatprep.subr.mxu0 0.0
    %976 = vmatpush1.msra.mxu0 0.0
    %977 = vmatprep.subr.mxu0 0.0
    %978 = vmatpush1.msra.mxu0 0.0
    %979 = vmatprep.subr.mxu0 0.0
    %980 = vmatpush1.msra.mxu0 0.0
    %981 = vmatprep.subr.mxu0 0.0
    %982 = vmatpush1.msra.mxu0 0.0
    %983 = vmatprep.subr.mxu0 0.0
    %984 = vmatpush1.msra.mxu0 0.0
    %985 = vmatprep.subr.mxu0 0.0
    %986 = vmatpush1.msra.mxu0 0.0
    %987 = vmatprep.subr.mxu0 0.0
    %988 = vmatpush1.msra.mxu0 0.0
    %989 = vmatprep.subr.mxu0 0.0
    %990 = vmatpush1.msra.mxu0 0.0
    %991 = vmatprep.subr.mxu0 0.0
    %992 = vmatpush1.msra.mxu0 0.0
    %993 = vmatprep.subr.mxu0 0.0
    %994 = vmatpush1.msra.mxu0 0.0
    %995 = vmatprep.subr.mxu0 0.0
    %996 = vmatpush1.msra.mxu0 0.0
    %997 = vmatprep.subr.mxu0 0.0
    %998 = vmatpush1.msra.mxu0 0.0
    %999 = vmatprep.subr.mxu0 0.0
    %1000 = vmatpush1.msra.mxu0 0.0
    %1001 = vmatprep.subr.mxu0 0.0
    %1002 = vmatpush1.msra.mxu0 0.0
    %1003 = vmatprep.subr.mxu0 0.0
    %1004 = vmatpush1.msra.mxu0 0.0
    %1005 = vmatprep.subr.mxu0 0.0
    %1006 = vmatpush1.msra.mxu0 0.0
    %1007 = vmatprep.subr.mxu0 0.0
    %1008 = vmatpush1.msra.mxu0 0.0
    %1009 = vmatprep.subr.mxu0 0.0
    %1010 = vmatpush1.msra.mxu0 0.0
    %1011 = vmatprep.subr.mxu0 0.0
    %1012 = vmatpush1.msra.mxu0 0.0
    %1013 = vmatprep.subr.mxu0 0.0
    %1014 = vmatpush1.msra.mxu0 0.0
    %1015 = vmatprep.subr.mxu0 0.0
    %1016 = vmatpush1.msra.mxu0 0.0
    %1017 = vmatprep.subr.mxu0 0.0
    %1018 = vmatpush1.msra.mxu0 0.0
    %1019 = vmatprep.subr.mxu0 0.0
    %1020 = vmatpush1.msra.mxu0 0.0
    %1021 = vmatprep.mubr.f32.mxu0 0.0
    %1022 = vmatmul.mubr.f32.gmra.mrb[0].mxu0 %v955
    %v1023 = vpop.f32.mrb[0].mxu0
    %v1024 = vadd.f32 0.0, %v1023
    %v1025 = vpop.f32.mrb[0].mxu0
    %1026 = vdwg.mxu0
    %v1028 = vrot.slane %v1024, 4
    %v1030 = vadd.f32 %v168, %v1028
    %v1031 = vxor.u32 %v1030, 2147483648
    %v1032 = vmul.f32 %v1031, 1.442695
    %v1033 = vpow.pop %v1032
    %v1034 = vadd.f32 %v1033, 1.0
    %v1035 = vrcp.pop %v1034
    %v1036 = vmul.f32 1.0, %v1035
    %v1037 = vadd.f32 %v1024, %v258
    %v1039 = vrot.slane %v1037, 4
    %1040 = vrot.lane.b32.xlu0 %v1039, 64
    %v1041 = vpop.permute.xlu0 %1040
    %v1043 = vmul.f32 %v1036, %v1041
    %1045 = vrot.lane.b32.xlu0 %v1043, 64
    %v1046 = vpop.permute.xlu0 %1045
    %v1048 = vadd.f32 %v168, %v1046
    %v1049 = vtanh.pop %v1048
    %v1051 = vrot.slane %v1049, 4
    %v1053 = vsub.f32 %v951, %v1051
    %v1055 = vrot.slane %v1053, 4
    %1056 = vrot.lane.b32.xlu0 %v1055, 96
    %v1057 = vpop.permute.xlu0 %1056
    %v1059 = vmul.f32 %v1036, %v1057
    %1061 = vrot.lane.b32.xlu0 %v1059, 32
    %v1062 = vpop.permute.xlu0 %1061
    %v1064 = vadd.f32 %v1049, %v1062
    %v1066 = vrot.slane %v1064, 4
    %vm1068 = vcmask 781824
    %v1069 = vsel %vm1068, %v1066, 0.0
    %v1070 = vrot.slane %v1069, 4
    %v1071 = vadd.f32 %v1069, %v1070
    %v1072 = vrot.slane %v1071, 2
    %v1073 = vadd.f32 %v1071, %v1072
    %v1074 = vrot.slane %v1073, 1
    %v1075 = vadd.f32 %v1073, %v1074
    %v1076 = vmul.f32 %v1075, 0.25
    %v1077 = vld [vmem:[%s5] sm:$0xff]
    %v1078 = vld [vmem:[%s5 + $0x8] sm:$0xff]
    %v1079 = vld [vmem:[%s5 + $0x10] sm:$0xff]
    %v1080 = vld [vmem:[%s5 + $0x18] sm:$0xff]
    %v1081 = vld [vmem:[%s6] sm:$0x1]
    %1083 = vrot.lane.b32.xlu0 %v1076, 64
    %v1084 = vpop.permute.xlu0 %1083
    %v1085 = vsel %vm171, %v1084, 0
    %1087 = vmatprep.subr.mxu0 0.0
    %1088 = vmatpush1.msra.mxu0 %v1077
    %1089 = vmatprep.subr.mxu0 0.0
    %1090 = vmatpush1.msra.mxu0 %v1078
    %1091 = vmatprep.subr.mxu0 0.0
    %1092 = vmatpush1.msra.mxu0 %v1079
    %1093 = vmatprep.subr.mxu0 0.0
    %1094 = vmatpush1.msra.mxu0 %v1080
    %1095 = vmatprep.subr.mxu0 0.0
    %1096 = vmatpush1.msra.mxu0 0.0
    %1097 = vmatprep.subr.mxu0 0.0
    %1098 = vmatpush1.msra.mxu0 0.0
    %1099 = vmatprep.subr.mxu0 0.0
    %1100 = vmatpush1.msra.mxu0 0.0
    %1101 = vmatprep.subr.mxu0 0.0
    %1102 = vmatpush1.msra.mxu0 0.0
    %1103 = vmatprep.subr.mxu0 0.0
    %1104 = vmatpush1.msra.mxu0 0.0
    %1105 = vmatprep.subr.mxu0 0.0
    %1106 = vmatpush1.msra.mxu0 0.0
    %1107 = vmatprep.subr.mxu0 0.0
    %1108 = vmatpush1.msra.mxu0 0.0
    %1109 = vmatprep.subr.mxu0 0.0
    %1110 = vmatpush1.msra.mxu0 0.0
    %1111 = vmatprep.subr.mxu0 0.0
    %1112 = vmatpush1.msra.mxu0 0.0
    %1113 = vmatprep.subr.mxu0 0.0
    %1114 = vmatpush1.msra.mxu0 0.0
    %1115 = vmatprep.subr.mxu0 0.0
    %1116 = vmatpush1.msra.mxu0 0.0
    %1117 = vmatprep.subr.mxu0 0.0
    %1118 = vmatpush1.msra.mxu0 0.0
    %1119 = vmatprep.subr.mxu0 0.0
    %1120 = vmatpush1.msra.mxu0 0.0
    %1121 = vmatprep.subr.mxu0 0.0
    %1122 = vmatpush1.msra.mxu0 0.0
    %1123 = vmatprep.subr.mxu0 0.0
    %1124 = vmatpush1.msra.mxu0 0.0
    %1125 = vmatprep.subr.mxu0 0.0
    %1126 = vmatpush1.msra.mxu0 0.0
    %1127 = vmatprep.subr.mxu0 0.0
    %1128 = vmatpush1.msra.mxu0 0.0
    %1129 = vmatprep.subr.mxu0 0.0
    %1130 = vmatpush1.msra.mxu0 0.0
    %1131 = vmatprep.subr.mxu0 0.0
    %1132 = vmatpush1.msra.mxu0 0.0
    %1133 = vmatprep.subr.mxu0 0.0
    %1134 = vmatpush1.msra.mxu0 0.0
    %1135 = vmatprep.subr.mxu0 0.0
    %1136 = vmatpush1.msra.mxu0 0.0
    %1137 = vmatprep.subr.mxu0 0.0
    %1138 = vmatpush1.msra.mxu0 0.0
    %1139 = vmatprep.subr.mxu0 0.0
    %1140 = vmatpush1.msra.mxu0 0.0
    %1141 = vmatprep.subr.mxu0 0.0
    %1142 = vmatpush1.msra.mxu0 0.0
    %1143 = vmatprep.subr.mxu0 0.0
    %1144 = vmatpush1.msra.mxu0 0.0
    %1145 = vmatprep.subr.mxu0 0.0
    %1146 = vmatpush1.msra.mxu0 0.0
    %1147 = vmatprep.subr.mxu0 0.0
    %1148 = vmatpush1.msra.mxu0 0.0
    %1149 = vmatprep.subr.mxu0 0.0
    %1150 = vmatpush1.msra.mxu0 0.0
    %1151 = vmatprep.mubr.f32.mxu0 0.0
    %1152 = vmatmul.mubr.f32.gmra.mrb[0].mxu0 %v1085
    %v1153 = vpop.f32.mrb[0].mxu0
    %v1154 = vadd.f32 %v1081, %v1153
    %v1155 = vpop.f32.mrb[0].mxu0
    %1156 = vdwg.mxu0
    %vm1157 = vcmp.ge.f32.partialorder %v1154, 0.0
    %v1158 = vmul.f32 %v1154, 0.01
    %v1159 = vsel %vm1157, %v1154, %v1158
    %v1160 = vld [vmem:[%s7] sm:$0xff]
    %v1161 = vld [vmem:[%s7 + $0x8] sm:$0xff]
    %v1162 = vld [vmem:[%s7 + $0x10] sm:$0xff]
    %v1163 = vld [vmem:[%s7 + $0x18] sm:$0xff]
    %v1164 = vld [vmem:[%s8] sm:$0x1]
    %v1166 = vsel %vm171, %v1159, 0
    %1168 = vmatprep.subr.mxu0 0.0
    %1169 = vmatpush1.msra.mxu0 %v1160
    %1170 = vmatprep.subr.mxu0 0.0
    %1171 = vmatpush1.msra.mxu0 %v1161
    %1172 = vmatprep.subr.mxu0 0.0
    %1173 = vmatpush1.msra.mxu0 %v1162
    %1174 = vmatprep.subr.mxu0 0.0
    %1175 = vmatpush1.msra.mxu0 %v1163
    %1176 = vmatprep.subr.mxu0 0.0
    %1177 = vmatpush1.msra.mxu0 0.0
    %1178 = vmatprep.subr.mxu0 0.0
    %1179 = vmatpush1.msra.mxu0 0.0
    %1180 = vmatprep.subr.mxu0 0.0
    %1181 = vmatpush1.msra.mxu0 0.0
    %1182 = vmatprep.subr.mxu0 0.0
    %1183 = vmatpush1.msra.mxu0 0.0
    %1184 = vmatprep.subr.mxu0 0.0
    %1185 = vmatpush1.msra.mxu0 0.0
    %1186 = vmatprep.subr.mxu0 0.0
    %1187 = vmatpush1.msra.mxu0 0.0
    %1188 = vmatprep.subr.mxu0 0.0
    %1189 = vmatpush1.msra.mxu0 0.0
    %1190 = vmatprep.subr.mxu0 0.0
    %1191 = vmatpush1.msra.mxu0 0.0
    %1192 = vmatprep.subr.mxu0 0.0
    %1193 = vmatpush1.msra.mxu0 0.0
    %1194 = vmatprep.subr.mxu0 0.0
    %1195 = vmatpush1.msra.mxu0 0.0
    %1196 = vmatprep.subr.mxu0 0.0
    %1197 = vmatpush1.msra.mxu0 0.0
    %1198 = vmatprep.subr.mxu0 0.0
    %1199 = vmatpush1.msra.mxu0 0.0
    %1200 = vmatprep.subr.mxu0 0.0
    %1201 = vmatpush1.msra.mxu0 0.0
    %1202 = vmatprep.subr.mxu0 0.0
    %1203 = vmatpush1.msra.mxu0 0.0
    %1204 = vmatprep.subr.mxu0 0.0
    %1205 = vmatpush1.msra.mxu0 0.0
    %1206 = vmatprep.subr.mxu0 0.0
    %1207 = vmatpush1.msra.mxu0 0.0
    %1208 = vmatprep.subr.mxu0 0.0
    %1209 = vmatpush1.msra.mxu0 0.0
    %1210 = vmatprep.subr.mxu0 0.0
    %1211 = vmatpush1.msra.mxu0 0.0
    %1212 = vmatprep.subr.mxu0 0.0
    %1213 = vmatpush1.msra.mxu0 0.0
    %1214 = vmatprep.subr.mxu0 0.0
    %1215 = vmatpush1.msra.mxu0 0.0
    %1216 = vmatprep.subr.mxu0 0.0
    %1217 = vmatpush1.msra.mxu0 0.0
    %1218 = vmatprep.subr.mxu0 0.0
    %1219 = vmatpush1.msra.mxu0 0.0
    %1220 = vmatprep.subr.mxu0 0.0
    %1221 = vmatpush1.msra.mxu0 0.0
    %1222 = vmatprep.subr.mxu0 0.0
    %1223 = vmatpush1.msra.mxu0 0.0
    %1224 = vmatprep.subr.mxu0 0.0
    %1225 = vmatpush1.msra.mxu0 0.0
    %1226 = vmatprep.subr.mxu0 0.0
    %1227 = vmatpush1.msra.mxu0 0.0
    %1228 = vmatprep.subr.mxu0 0.0
    %1229 = vmatpush1.msra.mxu0 0.0
    %1230 = vmatprep.subr.mxu0 0.0
    %1231 = vmatpush1.msra.mxu0 0.0
    %1232 = vmatprep.mubr.f32.mxu0 0.0
    %1233 = vmatmul.mubr.f32.gmra.mrb[0].mxu0 %v1166
    %v1234 = vpop.f32.mrb[0].mxu0
    %v1235 = vadd.f32 %v1164, %v1234
    %v1236 = vpop.f32.mrb[0].mxu0
    %1237 = vdwg.mxu0
    %v1238 = vmul.f32 %v1235, 0.5
    %v1239 = vmul.f32 %v1235, 0.70710677
    %v1240 = verf.f32.pop %v1239
    %v1241 = vadd.f32 %v1240, 1.0
    %v1242 = vmul.f32 %v1238, %v1241
    %v1243 = vld [vmem:[%s9] sm:$0xff]
    %v1244 = vld [vmem:[%s9 + $0x8] sm:$0xff]
    %v1245 = vld [vmem:[%s9 + $0x10] sm:$0xff]
    %v1246 = vld [vmem:[%s9 + $0x18] sm:$0xff]
    %v1247 = vld [vmem:[#allocation2] sm:$0x1]
    %v1249 = vsel %vm171, %v1242, 0
    %1251 = vmatprep.subr.mxu0 0.0
    %1252 = vmatpush1.msra.mxu0 %v1243
    %1253 = vmatprep.subr.mxu0 0.0
    %1254 = vmatpush1.msra.mxu0 %v1244
    %1255 = vmatprep.subr.mxu0 0.0
    %1256 = vmatpush1.msra.mxu0 %v1245
    %1257 = vmatprep.subr.mxu0 0.0
    %1258 = vmatpush1.msra.mxu0 %v1246
    %1259 = vmatprep.subr.mxu0 0.0
    %1260 = vmatpush1.msra.mxu0 0.0
    %1261 = vmatprep.subr.mxu0 0.0
    %1262 = vmatpush1.msra.mxu0 0.0
    %1263 = vmatprep.subr.mxu0 0.0
    %1264 = vmatpush1.msra.mxu0 0.0
    %1265 = vmatprep.subr.mxu0 0.0
    %1266 = vmatpush1.msra.mxu0 0.0
    %1267 = vmatprep.subr.mxu0 0.0
    %1268 = vmatpush1.msra.mxu0 0.0
    %1269 = vmatprep.subr.mxu0 0.0
    %1270 = vmatpush1.msra.mxu0 0.0
    %1271 = vmatprep.subr.mxu0 0.0
    %1272 = vmatpush1.msra.mxu0 0.0
    %1273 = vmatprep.subr.mxu0 0.0
    %1274 = vmatpush1.msra.mxu0 0.0
    %1275 = vmatprep.subr.mxu0 0.0
    %1276 = vmatpush1.msra.mxu0 0.0
    %1277 = vmatprep.subr.mxu0 0.0
    %1278 = vmatpush1.msra.mxu0 0.0
    %1279 = vmatprep.subr.mxu0 0.0
    %1280 = vmatpush1.msra.mxu0 0.0
    %1281 = vmatprep.subr.mxu0 0.0
    %1282 = vmatpush1.msra.mxu0 0.0
    %1283 = vmatprep.subr.mxu0 0.0
    %1284 = vmatpush1.msra.mxu0 0.0
    %1285 = vmatprep.subr.mxu0 0.0
    %1286 = vmatpush1.msra.mxu0 0.0
    %1287 = vmatprep.subr.mxu0 0.0
    %1288 = vmatpush1.msra.mxu0 0.0
    %1289 = vmatprep.subr.mxu0 0.0
    %1290 = vmatpush1.msra.mxu0 0.0
    %1291 = vmatprep.subr.mxu0 0.0
    %1292 = vmatpush1.msra.mxu0 0.0
    %1293 = vmatprep.subr.mxu0 0.0
    %1294 = vmatpush1.msra.mxu0 0.0
    %1295 = vmatprep.subr.mxu0 0.0
    %1296 = vmatpush1.msra.mxu0 0.0
    %1297 = vmatprep.subr.mxu0 0.0
    %1298 = vmatpush1.msra.mxu0 0.0
    %1299 = vmatprep.subr.mxu0 0.0
    %1300 = vmatpush1.msra.mxu0 0.0
    %1301 = vmatprep.subr.mxu0 0.0
    %1302 = vmatpush1.msra.mxu0 0.0
    %1303 = vmatprep.subr.mxu0 0.0
    %1304 = vmatpush1.msra.mxu0 0.0
    %1305 = vmatprep.subr.mxu0 0.0
    %1306 = vmatpush1.msra.mxu0 0.0
    %1307 = vmatprep.subr.mxu0 0.0
    %1308 = vmatpush1.msra.mxu0 0.0
    %1309 = vmatprep.subr.mxu0 0.0
    %1310 = vmatpush1.msra.mxu0 0.0
    %1311 = vmatprep.subr.mxu0 0.0
    %1312 = vmatpush1.msra.mxu0 0.0
    %1313 = vmatprep.subr.mxu0 0.0
    %1314 = vmatpush1.msra.mxu0 0.0
    %1315 = vmatprep.mubr.f32.mxu0 0.0
    %1316 = vmatmul.mubr.f32.gmra.mrb[0].mxu0 %v1249
    %v1317 = vpop.f32.mrb[0].mxu0
    %v1318 = vadd.f32 %v1247, %v1317
    %v1319 = vpop.f32.mrb[0].mxu0
    %1320 = vdwg.mxu0
    %v1321 = vlaneseq
    %v1322 = vshrl.u32 %v1321, 7
    %v1323 = vsub.s32 0, %v1322
    %v1324 = vrot.slane %v1318, %v1323
    %vm1325 = vcmask 3072
    %1326 = vst.msk [vmem:[%s11] sm:$0xf] %vm1325, %v1324
    // Predicated region
    $region50: #{tpu_custom_call.1} parent=1 // pred_check
      _
    $region51: #{tpu_custom_call.1} parent=1 // pred_check_branch
      %1328 = sbr.rel (0) target = $region53
    $region52: #{tpu_custom_call.1} parent=1 // pred_region
      _
    $region53: #{tpu_custom_call.1} parent=1 // pred_fallthru
      _
    // Predicated region
    $region54: #{tpu_custom_call.1} parent=1 // pred_check
      _
    $region55: #{tpu_custom_call.1} parent=1 // pred_check_branch
      %1330 = sbr.rel (0) target = $region57
    $region56: #{tpu_custom_call.1} parent=1 // pred_region
      _
    $region57: #{tpu_custom_call.1} parent=1 // pred_fallthru
      _
    %1331 = vsyncpa [#allocation4], 1

</llo_original>
